<compile_context>
chip_gen: v6e
topology: v6e:2x2x1
jax: 0.10.0
libtpu: 0.0.40
codegen_flags: <defaults>
</compile_context>

<pallas_src>
import functools

import jax
import jax.numpy as jnp
from jax.experimental import pallas as pl
from jax.experimental.pallas import tpu as pltpu

FOLD = 8  # batch rows packed into the lane axis (one sublane-group's worth)


def _cdiv(a, b):
    return -(-a // b)


def _round_up(x, m):
    return _cdiv(x, m) * m


def _choose_fold_tile(b8_rows, tbs_cap):
    """Rows of the folded (B/8, 8*d) view processed per grid step.

    Large enough that the ~0.35us fixed per-step overhead is a small fraction
    of the step's HBM traffic (up to 1024 folded rows = 8192 batch rows), but
    capped so large batches still give >= ~8 grid steps (keeps both v7x
    TensorCores busy and the DMA pipeline full).  Folded blocks are lane-dense,
    so VMEM cost is only ~1.5 KiB per folded row -- far under the 32 MiB
    scoped-VMEM limit requested below even at the cap.
    """
    MIN_STEPS = 8
    if b8_rows <= FOLD:
        return max(b8_rows, 1)          # single exact block
    tbs = _round_up(_cdiv(b8_rows, MIN_STEPS), FOLD)
    return max(FOLD, min(tbs, tbs_cap, _round_up(b8_rows, FOLD)))


def _make_adapter_kernel(layer_sizes, fold):
    d_in, d_out = layer_sizes[0], layer_sizes[-1]
    n_layers = len(layer_sizes) - 1

    def kernel(x_ref, *args):
        # args = (W0, b0, W1, b1, ..., o_ref); weights/biases are VMEM-resident.
        o_ref = args[-1]
        wb = args[:-1]
        ws = [wb[2 * l][...] for l in range(n_layers)]                    # (d_i, d_o)
        bs = [wb[2 * l + 1][...].astype(jnp.float32) for l in range(n_layers)]  # (1, d_o)

        # The block packs `fold` consecutive batch rows along the lane axis
        # (lane-dense DMA in / writeback out).  Unpack sub-row k with a static
        # lane slice, run the fused Linear+ReLU stack in f32, and write the
        # result into lanes [k*d_out, (k+1)*d_out) of the dense output block.
        for k in range(fold):
            h = x_ref[:, k * d_in:(k + 1) * d_in]
            for l in range(n_layers):
                h = jnp.dot(h.astype(ws[l].dtype), ws[l],
                            preferred_element_type=jnp.float32) + bs[l]
                h = jnp.maximum(h, 0.0)          # ReLU, stays f32 between layers
            o_ref[:, k * d_out:(k + 1) * d_out] = h.astype(o_ref.dtype)

    return kernel


@functools.partial(jax.jit, static_argnames=("layer_sizes", "max_rows_per_tile"))
def adapter_forward(x, params, *, layer_sizes, max_rows_per_tile=8192):
    """Pallas equivalent of Adapter.forward.

    x:            (B, layer_sizes[0])
    params:       flat tuple (W0, b0, W1, b1, ...); W_l is (in_size, out_size)
                  (transposed PyTorch Linear weight), b_l is (1, out_size).
    layer_sizes:  static tuple of layer widths, e.g. (32, 64, 16).
    returns:      (B, layer_sizes[-1])
    """
    B, d_in = x.shape
    assert d_in == layer_sizes[0]
    d_out = layer_sizes[-1]
    n_layers = len(layer_sizes) - 1

    b_main = (B // FOLD) * FOLD          # rows handled by the fused kernel
    outs = []

    if b_main > 0:
        x_main = x if b_main == B else x[:b_main]
        b8 = b_main // FOLD
        # Free, layout-preserving reshape: (b_main, d_in) -> (b8, FOLD*d_in).
        x8 = x_main.reshape(b8, FOLD * d_in)

        tbs = _choose_fold_tile(b8, max(1, max_rows_per_tile // FOLD))
        grid = (pl.cdiv(b8, tbs),)       # ragged last block: Pallas masks the writeback

        in_specs = [pl.BlockSpec((tbs, FOLD * d_in), lambda i: (i, 0))]
        for d_i, d_o in zip(layer_sizes[:-1], layer_sizes[1:]):
            # Grid-invariant params: single VMEM buffer, no double-buffering.
            in_specs.append(pl.BlockSpec((d_i, d_o), lambda i: (0, 0),
                                         pipeline_mode=pl.Buffered(1)))
            in_specs.append(pl.BlockSpec((1, d_o), lambda i: (0, 0),
                                         pipeline_mode=pl.Buffered(1)))

        flops = 2 * b_main * sum(a * b for a, b in
                                 zip(layer_sizes[:-1], layer_sizes[1:]))
        bytes_accessed = (x8.size + b8 * FOLD * d_out) * x.dtype.itemsize
        bytes_accessed += sum(int(p.size) * p.dtype.itemsize for p in params)

        out8 = pl.pallas_call(
            _make_adapter_kernel(layer_sizes, FOLD),
            out_shape=jax.ShapeDtypeStruct((b8, FOLD * d_out), x.dtype),
            grid=grid,
            in_specs=in_specs,
            out_specs=pl.BlockSpec((tbs, FOLD * d_out), lambda i: (i, 0)),
            compiler_params=pltpu.CompilerParams(
                dimension_semantics=("parallel",),          # megacore sharding on v7x
                vmem_limit_bytes=32 * 1024 * 1024),          # never gated by v5e's 16 MiB default
            cost_estimate=pl.CostEstimate(flops=flops, transcendentals=0,
                                          bytes_accessed=bytes_accessed),
        )(x8, *params)
        outs.append(out8.reshape(b_main, d_out))   # free reshape back to (b_main, d_out)

    rem = B - b_main
    if rem:
        # < FOLD leftover rows: tiny pure-JAX epilogue instead of padding /
        # re-materializing the whole input through HBM.
        h = x[b_main:]
        for l in range(n_layers):
            h = jnp.maximum(h @ params[2 * l] + params[2 * l + 1], 0.0)
        outs.append(h.astype(x.dtype))

    return outs[0] if len(outs) == 1 else jnp.concatenate(outs, axis=0)


if __name__ == "__main__":
    key = jax.random.PRNGKey(0)

    # configs['layers'] for the adapter MLP; input hidden = 32.
    layer_sizes = (32, 64, 16)

    keys = jax.random.split(key, 1 + 2 * (len(layer_sizes) - 1))
    params = []
    for l, (d_i, d_o) in enumerate(zip(layer_sizes[:-1], layer_sizes[1:])):
        k_w, k_b = keys[1 + 2 * l], keys[2 + 2 * l]
        bound = 1.0 / (d_i ** 0.5)  # torch.nn.Linear default init range
        params.append(jax.random.uniform(k_w, (d_i, d_o), jnp.float32, -bound, bound))
        params.append(jax.random.uniform(k_b, (1, d_o), jnp.float32, -bound, bound))
    params = tuple(params)

    def reference(xv):
        h = xv
        for l in range(len(layer_sizes) - 1):
            h = jnp.maximum(h @ params[2 * l] + params[2 * l + 1], 0.0)
        return h

    # Case 1: batch a multiple of 8; multi-step grid with the default tile policy.
    x1 = jax.random.normal(keys[0], (512, layer_sizes[0]), dtype=jnp.float32)
    out1 = jax.block_until_ready(adapter_forward(x1, params, layer_sizes=layer_sizes))
    assert out1.shape == (512, layer_sizes[-1])
    assert jnp.allclose(out1, reference(x1), atol=1e-5, rtol=1e-5)

    # Case 2: ragged batch (non-multiple-of-8 remainder + ragged last grid block).
    x2 = jax.random.normal(jax.random.PRNGKey(1), (203, layer_sizes[0]),
                           dtype=jnp.float32)
    out2 = jax.block_until_ready(
        adapter_forward(x2, params, layer_sizes=layer_sizes, max_rows_per_tile=64))
    assert out2.shape == (203, layer_sizes[-1])
    assert jnp.allclose(out2, reference(x2), atol=1e-5, rtol=1e-5)

    print("KERNEL_OK")
</pallas_src>

<mosaic_0001>
module attributes {stable_mosaic.version = 11 : i64} {
  func.func @kernel(%arg0: i32, %arg1: memref<8x256xf32, #tpu.memory_space<vmem>>, %arg2: memref<32x64xf32, #tpu.memory_space<vmem>>, %arg3: memref<1x64xf32, #tpu.memory_space<vmem>>, %arg4: memref<64x16xf32, #tpu.memory_space<vmem>>, %arg5: memref<1x16xf32, #tpu.memory_space<vmem>>, %arg6: memref<8x128xf32, #tpu.memory_space<vmem>>) attributes {dimension_semantics = [#tpu.dimension_semantics<parallel>], iteration_bounds = array<i64: 8>, scalar_prefetch = 0 : i64, scratch_operands = 0 : i64, tpu.core_type = #tpu.core_type<tc>, window_params = [{transform_indices = @transform_0, window_bounds = array<i64: 8, 256>}, {pipeline_mode = #tpu.pipeline_mode<synchronous>, transform_indices = @transform_1, window_bounds = array<i64: 32, 64>}, {pipeline_mode = #tpu.pipeline_mode<synchronous>, transform_indices = @transform_2, window_bounds = array<i64: 1, 64>}, {pipeline_mode = #tpu.pipeline_mode<synchronous>, transform_indices = @transform_3, window_bounds = array<i64: 64, 16>}, {pipeline_mode = #tpu.pipeline_mode<synchronous>, transform_indices = @transform_4, window_bounds = array<i64: 1, 16>}, {transform_indices = @transform_5, window_bounds = array<i64: 8, 128>}]} {
    %c0 = arith.constant 0 : index
    %c0_0 = arith.constant 0 : index
    %0 = vector.load %arg2[%c0, %c0_0] : memref<32x64xf32, #tpu.memory_space<vmem>>, vector<32x64xf32>
    %c0_1 = arith.constant 0 : index
    %c0_2 = arith.constant 0 : index
    %1 = vector.load %arg4[%c0_1, %c0_2] : memref<64x16xf32, #tpu.memory_space<vmem>>, vector<64x16xf32>
    %c0_3 = arith.constant 0 : index
    %c0_4 = arith.constant 0 : index
    %2 = vector.load %arg3[%c0_3, %c0_4] : memref<1x64xf32, #tpu.memory_space<vmem>>, vector<1x64xf32>
    %c0_5 = arith.constant 0 : index
    %c0_6 = arith.constant 0 : index
    %3 = vector.load %arg5[%c0_5, %c0_6] : memref<1x16xf32, #tpu.memory_space<vmem>>, vector<1x16xf32>
    %c0_7 = arith.constant 0 : index
    %c0_8 = arith.constant 0 : index
    %4 = vector.load %arg1[%c0_7, %c0_8] : memref<8x256xf32, #tpu.memory_space<vmem>>, vector<8x32xf32>
    %cst = arith.constant dense<0.000000e+00> : vector<8x64xf32>
    %5 = tpu.matmul %4, %0, %cst {dimension_numbers = #tpu.dot_dimension_numbers<[1], [0], [0], [1], [0, 0, 1, 1], [], []>} : vector<8x32xf32>, vector<32x64xf32>, vector<8x64xf32> -> vector<8x64xf32>
    %6 = vector.broadcast %2 : vector<1x64xf32> to vector<8x64xf32>
    %7 = arith.addf %5, %6 : vector<8x64xf32>
    %cst_9 = arith.constant 0.000000e+00 : f32
    %8 = vector.broadcast %cst_9 : f32 to vector<8x64xf32>
    %9 = arith.maximumf %7, %8 : vector<8x64xf32>
    %cst_10 = arith.constant dense<0.000000e+00> : vector<8x16xf32>
    %10 = tpu.matmul %9, %1, %cst_10 {dimension_numbers = #tpu.dot_dimension_numbers<[1], [0], [0], [1], [0, 0, 1, 1], [], []>} : vector<8x64xf32>, vector<64x16xf32>, vector<8x16xf32> -> vector<8x16xf32>
    %11 = vector.broadcast %3 : vector<1x16xf32> to vector<8x16xf32>
    %12 = arith.addf %10, %11 : vector<8x16xf32>
    %cst_11 = arith.constant 0.000000e+00 : f32
    %13 = vector.broadcast %cst_11 : f32 to vector<8x16xf32>
    %14 = arith.maximumf %12, %13 : vector<8x16xf32>
    %c0_12 = arith.constant 0 : index
    %c0_13 = arith.constant 0 : index
    %15 = vector.load %arg6[%c0_12, %c0_13] : memref<8x128xf32, #tpu.memory_space<vmem>>, vector<8x16xf32>
    tpu.vector_store %arg6[%c0_12, %c0_13], %14 {strides = array<i32>} : memref<8x128xf32, #tpu.memory_space<vmem>>, vector<8x16xf32>,
    %c0_14 = arith.constant 0 : index
    %c32 = arith.constant 32 : index
    %16 = vector.load %arg1[%c0_14, %c32] : memref<8x256xf32, #tpu.memory_space<vmem>>, vector<8x32xf32>
    %cst_15 = arith.constant dense<0.000000e+00> : vector<8x64xf32>
    %17 = tpu.matmul %16, %0, %cst_15 {dimension_numbers = #tpu.dot_dimension_numbers<[1], [0], [0], [1], [0, 0, 1, 1], [], []>} : vector<8x32xf32>, vector<32x64xf32>, vector<8x64xf32> -> vector<8x64xf32>
    %18 = vector.broadcast %2 : vector<1x64xf32> to vector<8x64xf32>
    %19 = arith.addf %17, %18 : vector<8x64xf32>
    %cst_16 = arith.constant 0.000000e+00 : f32
    %20 = vector.broadcast %cst_16 : f32 to vector<8x64xf32>
    %21 = arith.maximumf %19, %20 : vector<8x64xf32>
    %cst_17 = arith.constant dense<0.000000e+00> : vector<8x16xf32>
    %22 = tpu.matmul %21, %1, %cst_17 {dimension_numbers = #tpu.dot_dimension_numbers<[1], [0], [0], [1], [0, 0, 1, 1], [], []>} : vector<8x64xf32>, vector<64x16xf32>, vector<8x16xf32> -> vector<8x16xf32>
    %23 = vector.broadcast %3 : vector<1x16xf32> to vector<8x16xf32>
    %24 = arith.addf %22, %23 : vector<8x16xf32>
    %cst_18 = arith.constant 0.000000e+00 : f32
    %25 = vector.broadcast %cst_18 : f32 to vector<8x16xf32>
    %26 = arith.maximumf %24, %25 : vector<8x16xf32>
    %c0_19 = arith.constant 0 : index
    %c16 = arith.constant 16 : index
    %27 = vector.load %arg6[%c0_19, %c16] : memref<8x128xf32, #tpu.memory_space<vmem>>, vector<8x16xf32>
    tpu.vector_store %arg6[%c0_19, %c16], %26 {strides = array<i32>} : memref<8x128xf32, #tpu.memory_space<vmem>>, vector<8x16xf32>,
    %c0_20 = arith.constant 0 : index
    %c64 = arith.constant 64 : index
    %28 = vector.load %arg1[%c0_20, %c64] : memref<8x256xf32, #tpu.memory_space<vmem>>, vector<8x32xf32>
    %cst_21 = arith.constant dense<0.000000e+00> : vector<8x64xf32>
    %29 = tpu.matmul %28, %0, %cst_21 {dimension_numbers = #tpu.dot_dimension_numbers<[1], [0], [0], [1], [0, 0, 1, 1], [], []>} : vector<8x32xf32>, vector<32x64xf32>, vector<8x64xf32> -> vector<8x64xf32>
    %30 = vector.broadcast %2 : vector<1x64xf32> to vector<8x64xf32>
    %31 = arith.addf %29, %30 : vector<8x64xf32>
    %cst_22 = arith.constant 0.000000e+00 : f32
    %32 = vector.broadcast %cst_22 : f32 to vector<8x64xf32>
    %33 = arith.maximumf %31, %32 : vector<8x64xf32>
    %cst_23 = arith.constant dense<0.000000e+00> : vector<8x16xf32>
    %34 = tpu.matmul %33, %1, %cst_23 {dimension_numbers = #tpu.dot_dimension_numbers<[1], [0], [0], [1], [0, 0, 1, 1], [], []>} : vector<8x64xf32>, vector<64x16xf32>, vector<8x16xf32> -> vector<8x16xf32>
    %35 = vector.broadcast %3 : vector<1x16xf32> to vector<8x16xf32>
    %36 = arith.addf %34, %35 : vector<8x16xf32>
    %cst_24 = arith.constant 0.000000e+00 : f32
    %37 = vector.broadcast %cst_24 : f32 to vector<8x16xf32>
    %38 = arith.maximumf %36, %37 : vector<8x16xf32>
    %c0_25 = arith.constant 0 : index
    %c32_26 = arith.constant 32 : index
    %39 = vector.load %arg6[%c0_25, %c32_26] : memref<8x128xf32, #tpu.memory_space<vmem>>, vector<8x16xf32>
    tpu.vector_store %arg6[%c0_25, %c32_26], %38 {strides = array<i32>} : memref<8x128xf32, #tpu.memory_space<vmem>>, vector<8x16xf32>,
    %c0_27 = arith.constant 0 : index
    %c96 = arith.constant 96 : index
    %40 = vector.load %arg1[%c0_27, %c96] : memref<8x256xf32, #tpu.memory_space<vmem>>, vector<8x32xf32>
    %cst_28 = arith.constant dense<0.000000e+00> : vector<8x64xf32>
    %41 = tpu.matmul %40, %0, %cst_28 {dimension_numbers = #tpu.dot_dimension_numbers<[1], [0], [0], [1], [0, 0, 1, 1], [], []>} : vector<8x32xf32>, vector<32x64xf32>, vector<8x64xf32> -> vector<8x64xf32>
    %42 = vector.broadcast %2 : vector<1x64xf32> to vector<8x64xf32>
    %43 = arith.addf %41, %42 : vector<8x64xf32>
    %cst_29 = arith.constant 0.000000e+00 : f32
    %44 = vector.broadcast %cst_29 : f32 to vector<8x64xf32>
    %45 = arith.maximumf %43, %44 : vector<8x64xf32>
    %cst_30 = arith.constant dense<0.000000e+00> : vector<8x16xf32>
    %46 = tpu.matmul %45, %1, %cst_30 {dimension_numbers = #tpu.dot_dimension_numbers<[1], [0], [0], [1], [0, 0, 1, 1], [], []>} : vector<8x64xf32>, vector<64x16xf32>, vector<8x16xf32> -> vector<8x16xf32>
    %47 = vector.broadcast %3 : vector<1x16xf32> to vector<8x16xf32>
    %48 = arith.addf %46, %47 : vector<8x16xf32>
    %cst_31 = arith.constant 0.000000e+00 : f32
    %49 = vector.broadcast %cst_31 : f32 to vector<8x16xf32>
    %50 = arith.maximumf %48, %49 : vector<8x16xf32>
    %c0_32 = arith.constant 0 : index
    %c48 = arith.constant 48 : index
    %51 = vector.load %arg6[%c0_32, %c48] : memref<8x128xf32, #tpu.memory_space<vmem>>, vector<8x16xf32>
    tpu.vector_store %arg6[%c0_32, %c48], %50 {strides = array<i32>} : memref<8x128xf32, #tpu.memory_space<vmem>>, vector<8x16xf32>,
    %c0_33 = arith.constant 0 : index
    %c128 = arith.constant 128 : index
    %52 = vector.load %arg1[%c0_33, %c128] : memref<8x256xf32, #tpu.memory_space<vmem>>, vector<8x32xf32>
    %cst_34 = arith.constant dense<0.000000e+00> : vector<8x64xf32>
    %53 = tpu.matmul %52, %0, %cst_34 {dimension_numbers = #tpu.dot_dimension_numbers<[1], [0], [0], [1], [0, 0, 1, 1], [], []>} : vector<8x32xf32>, vector<32x64xf32>, vector<8x64xf32> -> vector<8x64xf32>
    %54 = vector.broadcast %2 : vector<1x64xf32> to vector<8x64xf32>
    %55 = arith.addf %53, %54 : vector<8x64xf32>
    %cst_35 = arith.constant 0.000000e+00 : f32
    %56 = vector.broadcast %cst_35 : f32 to vector<8x64xf32>
    %57 = arith.maximumf %55, %56 : vector<8x64xf32>
    %cst_36 = arith.constant dense<0.000000e+00> : vector<8x16xf32>
    %58 = tpu.matmul %57, %1, %cst_36 {dimension_numbers = #tpu.dot_dimension_numbers<[1], [0], [0], [1], [0, 0, 1, 1], [], []>} : vector<8x64xf32>, vector<64x16xf32>, vector<8x16xf32> -> vector<8x16xf32>
    %59 = vector.broadcast %3 : vector<1x16xf32> to vector<8x16xf32>
    %60 = arith.addf %58, %59 : vector<8x16xf32>
    %cst_37 = arith.constant 0.000000e+00 : f32
    %61 = vector.broadcast %cst_37 : f32 to vector<8x16xf32>
    %62 = arith.maximumf %60, %61 : vector<8x16xf32>
    %c0_38 = arith.constant 0 : index
    %c64_39 = arith.constant 64 : index
    %63 = vector.load %arg6[%c0_38, %c64_39] : memref<8x128xf32, #tpu.memory_space<vmem>>, vector<8x16xf32>
    tpu.vector_store %arg6[%c0_38, %c64_39], %62 {strides = array<i32>} : memref<8x128xf32, #tpu.memory_space<vmem>>, vector<8x16xf32>,
    %c0_40 = arith.constant 0 : index
    %c160 = arith.constant 160 : index
    %64 = vector.load %arg1[%c0_40, %c160] : memref<8x256xf32, #tpu.memory_space<vmem>>, vector<8x32xf32>
    %cst_41 = arith.constant dense<0.000000e+00> : vector<8x64xf32>
    %65 = tpu.matmul %64, %0, %cst_41 {dimension_numbers = #tpu.dot_dimension_numbers<[1], [0], [0], [1], [0, 0, 1, 1], [], []>} : vector<8x32xf32>, vector<32x64xf32>, vector<8x64xf32> -> vector<8x64xf32>
    %66 = vector.broadcast %2 : vector<1x64xf32> to vector<8x64xf32>
    %67 = arith.addf %65, %66 : vector<8x64xf32>
    %cst_42 = arith.constant 0.000000e+00 : f32
    %68 = vector.broadcast %cst_42 : f32 to vector<8x64xf32>
    %69 = arith.maximumf %67, %68 : vector<8x64xf32>
    %cst_43 = arith.constant dense<0.000000e+00> : vector<8x16xf32>
    %70 = tpu.matmul %69, %1, %cst_43 {dimension_numbers = #tpu.dot_dimension_numbers<[1], [0], [0], [1], [0, 0, 1, 1], [], []>} : vector<8x64xf32>, vector<64x16xf32>, vector<8x16xf32> -> vector<8x16xf32>
    %71 = vector.broadcast %3 : vector<1x16xf32> to vector<8x16xf32>
    %72 = arith.addf %70, %71 : vector<8x16xf32>
    %cst_44 = arith.constant 0.000000e+00 : f32
    %73 = vector.broadcast %cst_44 : f32 to vector<8x16xf32>
    %74 = arith.maximumf %72, %73 : vector<8x16xf32>
    %c0_45 = arith.constant 0 : index
    %c80 = arith.constant 80 : index
    %75 = vector.load %arg6[%c0_45, %c80] : memref<8x128xf32, #tpu.memory_space<vmem>>, vector<8x16xf32>
    tpu.vector_store %arg6[%c0_45, %c80], %74 {strides = array<i32>} : memref<8x128xf32, #tpu.memory_space<vmem>>, vector<8x16xf32>,
    %c0_46 = arith.constant 0 : index
    %c192 = arith.constant 192 : index
    %76 = vector.load %arg1[%c0_46, %c192] : memref<8x256xf32, #tpu.memory_space<vmem>>, vector<8x32xf32>
    %cst_47 = arith.constant dense<0.000000e+00> : vector<8x64xf32>
    %77 = tpu.matmul %76, %0, %cst_47 {dimension_numbers = #tpu.dot_dimension_numbers<[1], [0], [0], [1], [0, 0, 1, 1], [], []>} : vector<8x32xf32>, vector<32x64xf32>, vector<8x64xf32> -> vector<8x64xf32>
    %78 = vector.broadcast %2 : vector<1x64xf32> to vector<8x64xf32>
    %79 = arith.addf %77, %78 : vector<8x64xf32>
    %cst_48 = arith.constant 0.000000e+00 : f32
    %80 = vector.broadcast %cst_48 : f32 to vector<8x64xf32>
    %81 = arith.maximumf %79, %80 : vector<8x64xf32>
    %cst_49 = arith.constant dense<0.000000e+00> : vector<8x16xf32>
    %82 = tpu.matmul %81, %1, %cst_49 {dimension_numbers = #tpu.dot_dimension_numbers<[1], [0], [0], [1], [0, 0, 1, 1], [], []>} : vector<8x64xf32>, vector<64x16xf32>, vector<8x16xf32> -> vector<8x16xf32>
    %83 = vector.broadcast %3 : vector<1x16xf32> to vector<8x16xf32>
    %84 = arith.addf %82, %83 : vector<8x16xf32>
    %cst_50 = arith.constant 0.000000e+00 : f32
    %85 = vector.broadcast %cst_50 : f32 to vector<8x16xf32>
    %86 = arith.maximumf %84, %85 : vector<8x16xf32>
    %c0_51 = arith.constant 0 : index
    %c96_52 = arith.constant 96 : index
    %87 = vector.load %arg6[%c0_51, %c96_52] : memref<8x128xf32, #tpu.memory_space<vmem>>, vector<8x16xf32>
    tpu.vector_store %arg6[%c0_51, %c96_52], %86 {strides = array<i32>} : memref<8x128xf32, #tpu.memory_space<vmem>>, vector<8x16xf32>,
    %c0_53 = arith.constant 0 : index
    %c224 = arith.constant 224 : index
    %88 = vector.load %arg1[%c0_53, %c224] : memref<8x256xf32, #tpu.memory_space<vmem>>, vector<8x32xf32>
    %cst_54 = arith.constant dense<0.000000e+00> : vector<8x64xf32>
    %89 = tpu.matmul %88, %0, %cst_54 {dimension_numbers = #tpu.dot_dimension_numbers<[1], [0], [0], [1], [0, 0, 1, 1], [], []>} : vector<8x32xf32>, vector<32x64xf32>, vector<8x64xf32> -> vector<8x64xf32>
    %90 = vector.broadcast %2 : vector<1x64xf32> to vector<8x64xf32>
    %91 = arith.addf %89, %90 : vector<8x64xf32>
    %cst_55 = arith.constant 0.000000e+00 : f32
    %92 = vector.broadcast %cst_55 : f32 to vector<8x64xf32>
    %93 = arith.maximumf %91, %92 : vector<8x64xf32>
    %cst_56 = arith.constant dense<0.000000e+00> : vector<8x16xf32>
    %94 = tpu.matmul %93, %1, %cst_56 {dimension_numbers = #tpu.dot_dimension_numbers<[1], [0], [0], [1], [0, 0, 1, 1], [], []>} : vector<8x64xf32>, vector<64x16xf32>, vector<8x16xf32> -> vector<8x16xf32>
    %95 = vector.broadcast %3 : vector<1x16xf32> to vector<8x16xf32>
    %96 = arith.addf %94, %95 : vector<8x16xf32>
    %cst_57 = arith.constant 0.000000e+00 : f32
    %97 = vector.broadcast %cst_57 : f32 to vector<8x16xf32>
    %98 = arith.maximumf %96, %97 : vector<8x16xf32>
    %c0_58 = arith.constant 0 : index
    %c112 = arith.constant 112 : index
    %99 = vector.load %arg6[%c0_58, %c112] : memref<8x128xf32, #tpu.memory_space<vmem>>, vector<8x16xf32>
    tpu.vector_store %arg6[%c0_58, %c112], %98 {strides = array<i32>} : memref<8x128xf32, #tpu.memory_space<vmem>>, vector<8x16xf32>,
    return
  }
  func.func @transform_0(%arg0: i32) -> (i32, i32) {
    %c0_i32 = arith.constant 0 : i32
    %c0_i32_0 = arith.constant 0 : i32
    return %arg0, %c0_i32 : i32, i32
  }
  func.func @transform_1(%arg0: i32) -> (i32, i32) {
    %c0_i32 = arith.constant 0 : i32
    %c0_i32_0 = arith.constant 0 : i32
    %c0_i32_1 = arith.constant 0 : i32
    return %c0_i32, %c0_i32_0 : i32, i32
  }
  func.func @transform_2(%arg0: i32) -> (i32, i32) {
    %c0_i32 = arith.constant 0 : i32
    %c0_i32_0 = arith.constant 0 : i32
    %c0_i32_1 = arith.constant 0 : i32
    return %c0_i32, %c0_i32_0 : i32, i32
  }
  func.func @transform_3(%arg0: i32) -> (i32, i32) {
    %c0_i32 = arith.constant 0 : i32
    %c0_i32_0 = arith.constant 0 : i32
    %c0_i32_1 = arith.constant 0 : i32
    return %c0_i32, %c0_i32_0 : i32, i32
  }
  func.func @transform_4(%arg0: i32) -> (i32, i32) {
    %c0_i32 = arith.constant 0 : i32
    %c0_i32_0 = arith.constant 0 : i32
    %c0_i32_1 = arith.constant 0 : i32
    return %c0_i32, %c0_i32_0 : i32, i32
  }
  func.func @transform_5(%arg0: i32) -> (i32, i32) {
    %c0_i32 = arith.constant 0 : i32
    %c0_i32_0 = arith.constant 0 : i32
    return %arg0, %c0_i32 : i32, i32
  }
}

</mosaic_0001>

<llo_original>
// kernel: adapter_forward.1
$region0: #{adapter_forward.1}
  #allocation0 [shape = 'u32[]', space=smem, size = 0x4, offset = 0x4, fixed_abs, tag = 'smem constant byte address 0x4 - core index']
  #allocation1 [shape = 'u32[144,128]{1,0:T(1,128)}', space=vmem, size = 0x12000, scoped, tag = 'internal scratch']
  %s0 = inlined_call_operand.vmem [shape: f32[64,256], index: 0, kind: input, shape index: {}]
  %s1 = inlined_call_operand.vmem [shape: f32[32,64], index: 1, kind: input, shape index: {}]
  %s2 = inlined_call_operand.vmem [shape: f32[1,64], index: 2, kind: input, shape index: {}]
  %s3 = inlined_call_operand.vmem [shape: f32[64,16], index: 3, kind: input, shape index: {}]
  %s4 = inlined_call_operand.vmem [shape: f32[1,16], index: 4, kind: input, shape index: {}]
  %s5 = inlined_call_operand.vmem [shape: f32[64,128], index: 5, kind: output, shape index: {}]
  %s6 = sld [smem:[#allocation0]]
  $region53: #{adapter_forward.1} parent=0
    _
  %s8 = ssub.s32 1, %s6
  %s9 = scalar_select 0, %s8, %s6
  loop: start=0, step=1, limit=10
  $region2: #{adapter_forward.1} parent=0 // loop_pre_header
    _
  $region3: #{adapter_forward.1} parent=0 // loop_header
    %s11 = sphi 0, %s15
    %p12 = scmp.ge.s32.totalorder %s11, 10
    %s21 = sphi 0, %s23
    %s24 = sphi 0, %s21
    %s25 = sphi 0, %s24
    %s41 = sphi 0, %s25
    %s45 = sphi 0, %s45
    %s47 = sphi 0, %s45
    %s48 = sphi 0, %s47
    %s62 = sphi 0, %s48
    %s66 = sphi 0, %s66
    %s68 = sphi 0, %s66
    %s69 = sphi 0, %s68
    %s83 = sphi 0, %s69
    %s87 = sphi 0, %s87
    %s89 = sphi 0, %s87
    %s90 = sphi 0, %s89
    %s104 = sphi 0, %s90
    %s108 = sphi 0, %s108
    %s110 = sphi 0, %s108
    %s111 = sphi 0, %s110
    %s125 = sphi 0, %s111
    %s131 = sphi 0, %s133
    %s134 = sphi 0, %s131
    %s135 = sphi 0, %s134
    %s151 = sphi 0, %s135
  $region4: #{adapter_forward.1} parent=0 // loop_header_branch
    %14 = sbr.rel (%p12) target = $region8
  $region5: #{adapter_forward.1} parent=0 // loop_body
    %s16 = ssub.s32 %s11, 1
    %s17 = ssub.s32 %s11, 2
    %s18 = sadd.s32 %s11, 1
    %s19 = ssub.s32 %s11, %s18
    %p20 = scmp.eq.s32.totalorder %s19, 0
    %s22 = sadd.s32 %s21, 1
    %s23 = scalar_select %p20, %s21, %s22
    %p26 = pneg %p20
    %p27 = scmp.eq.s32.totalorder %s11, 7
    %p28 = por %p26, %p27
    %p29 = scmp.ne.s32.totalorder %s21, %s24
    %p30 = scmp.eq.s32.totalorder %s11, 0
    %p31 = por %p29, %p30
    %p32 = scmp.ne.s32.totalorder %s21, %s24
    %p33 = scmp.eq.s32.totalorder %s16, 7
    %p34 = por %p32, %p33
    %p35 = scmp.ne.s32.totalorder %s24, %s25
    %p36 = scmp.eq.s32.totalorder %s16, 0
    %p37 = por %p35, %p36
    %p38 = scmp.ne.s32.totalorder %s24, %s25
    %p39 = scmp.eq.s32.totalorder %s17, 7
    %p40 = por %p38, %p39
    %p42 = scmp.ne.s32.totalorder %s25, %s41
    %p43 = scmp.eq.s32.totalorder %s17, 0
    %p44 = por %p42, %p43
    %s46 = sadd.s32 %s45, 1
    %p49 = scmp.eq.s32.totalorder %s11, 7
    %p50 = scmp.ne.s32.totalorder %s45, %s47
    %p51 = scmp.eq.s32.totalorder %s11, 0
    %p52 = por %p50, %p51
    %p53 = scmp.ne.s32.totalorder %s45, %s47
    %p54 = scmp.eq.s32.totalorder %s16, 7
    %p55 = por %p53, %p54
    %p56 = scmp.ne.s32.totalorder %s47, %s48
    %p57 = scmp.eq.s32.totalorder %s16, 0
    %p58 = por %p56, %p57
    %p59 = scmp.ne.s32.totalorder %s47, %s48
    %p60 = scmp.eq.s32.totalorder %s17, 7
    %p61 = por %p59, %p60
    %p63 = scmp.ne.s32.totalorder %s48, %s62
    %p64 = scmp.eq.s32.totalorder %s17, 0
    %p65 = por %p63, %p64
    %s67 = sadd.s32 %s66, 1
    %p70 = scmp.eq.s32.totalorder %s11, 7
    %p71 = scmp.ne.s32.totalorder %s66, %s68
    %p72 = scmp.eq.s32.totalorder %s11, 0
    %p73 = por %p71, %p72
    %p74 = scmp.ne.s32.totalorder %s66, %s68
    %p75 = scmp.eq.s32.totalorder %s16, 7
    %p76 = por %p74, %p75
    %p77 = scmp.ne.s32.totalorder %s68, %s69
    %p78 = scmp.eq.s32.totalorder %s16, 0
    %p79 = por %p77, %p78
    %p80 = scmp.ne.s32.totalorder %s68, %s69
    %p81 = scmp.eq.s32.totalorder %s17, 7
    %p82 = por %p80, %p81
    %p84 = scmp.ne.s32.totalorder %s69, %s83
    %p85 = scmp.eq.s32.totalorder %s17, 0
    %p86 = por %p84, %p85
    %s88 = sadd.s32 %s87, 1
    %p91 = scmp.eq.s32.totalorder %s11, 7
    %p92 = scmp.ne.s32.totalorder %s87, %s89
    %p93 = scmp.eq.s32.totalorder %s11, 0
    %p94 = por %p92, %p93
    %p95 = scmp.ne.s32.totalorder %s87, %s89
    %p96 = scmp.eq.s32.totalorder %s16, 7
    %p97 = por %p95, %p96
    %p98 = scmp.ne.s32.totalorder %s89, %s90
    %p99 = scmp.eq.s32.totalorder %s16, 0
    %p100 = por %p98, %p99
    %p101 = scmp.ne.s32.totalorder %s89, %s90
    %p102 = scmp.eq.s32.totalorder %s17, 7
    %p103 = por %p101, %p102
    %p105 = scmp.ne.s32.totalorder %s90, %s104
    %p106 = scmp.eq.s32.totalorder %s17, 0
    %p107 = por %p105, %p106
    %s109 = sadd.s32 %s108, 1
    %p112 = scmp.eq.s32.totalorder %s11, 7
    %p113 = scmp.ne.s32.totalorder %s108, %s110
    %p114 = scmp.eq.s32.totalorder %s11, 0
    %p115 = por %p113, %p114
    %p116 = scmp.ne.s32.totalorder %s108, %s110
    %p117 = scmp.eq.s32.totalorder %s16, 7
    %p118 = por %p116, %p117
    %p119 = scmp.ne.s32.totalorder %s110, %s111
    %p120 = scmp.eq.s32.totalorder %s16, 0
    %p121 = por %p119, %p120
    %p122 = scmp.ne.s32.totalorder %s110, %s111
    %p123 = scmp.eq.s32.totalorder %s17, 7
    %p124 = por %p122, %p123
    %p126 = scmp.ne.s32.totalorder %s111, %s125
    %p127 = scmp.eq.s32.totalorder %s17, 0
    %p128 = por %p126, %p127
    %s129 = ssub.s32 %s11, %s18
    %p130 = scmp.eq.s32.totalorder %s129, 0
    %s132 = sadd.s32 %s131, 1
    %s133 = scalar_select %p130, %s131, %s132
    %p136 = pneg %p130
    %p137 = scmp.eq.s32.totalorder %s11, 7
    %p138 = por %p136, %p137
    %p139 = scmp.ne.s32.totalorder %s131, %s134
    %p140 = scmp.eq.s32.totalorder %s11, 0
    %p141 = por %p139, %p140
    %p142 = scmp.ne.s32.totalorder %s131, %s134
    %p143 = scmp.eq.s32.totalorder %s16, 7
    %p144 = por %p142, %p143
    %p145 = scmp.ne.s32.totalorder %s134, %s135
    %p146 = scmp.eq.s32.totalorder %s16, 0
    %p147 = por %p145, %p146
    %p148 = scmp.ne.s32.totalorder %s134, %s135
    %p149 = scmp.eq.s32.totalorder %s17, 7
    %p150 = por %p148, %p149
    %p152 = scmp.ne.s32.totalorder %s135, %s151
    %p153 = scmp.eq.s32.totalorder %s17, 0
    %p154 = por %p152, %p153
    %p155 = scmp.le.s32.totalorder 1, %s11
    %p156 = scmp.lt.s32.totalorder %s11, 9
    %p157 = pnand %p155, %p156
    %p158 = pneg %p157
    // Predicated region
    $region9: #{adapter_forward.1} parent=5 // pred_check
      _
    $region10: #{adapter_forward.1} parent=5 // pred_check_branch
      %160 = sbr.rel (%p157) target = $region12
    $region11: #{adapter_forward.1} parent=5 // pred_region
      %s161 = ssub.s32 %s11, 1
      // Predicated region
      $region13: #{adapter_forward.1} parent=11 // pred_check
        %p162 = pneg %p58
      $region14: #{adapter_forward.1} parent=11 // pred_check_branch
        %164 = sbr.rel (%p162) target = $region16
      $region15: #{adapter_forward.1} parent=11 // pred_region
        _
      $region16: #{adapter_forward.1} parent=11 // pred_fallthru
        _
      // Predicated region
      $region17: #{adapter_forward.1} parent=11 // pred_check
        %p165 = pneg %p79
      $region18: #{adapter_forward.1} parent=11 // pred_check_branch
        %167 = sbr.rel (%p165) target = $region20
      $region19: #{adapter_forward.1} parent=11 // pred_region
        _
      $region20: #{adapter_forward.1} parent=11 // pred_fallthru
        _
      // Predicated region
      $region21: #{adapter_forward.1} parent=11 // pred_check
        %p168 = pneg %p100
      $region22: #{adapter_forward.1} parent=11 // pred_check_branch
        %170 = sbr.rel (%p168) target = $region24
      $region23: #{adapter_forward.1} parent=11 // pred_region
        _
      $region24: #{adapter_forward.1} parent=11 // pred_fallthru
        _
      // Predicated region
      $region25: #{adapter_forward.1} parent=11 // pred_check
        %p171 = pneg %p121
      $region26: #{adapter_forward.1} parent=11 // pred_check_branch
        %173 = sbr.rel (%p171) target = $region28
      $region27: #{adapter_forward.1} parent=11 // pred_region
        _
      $region28: #{adapter_forward.1} parent=11 // pred_fallthru
        _
    $region12: #{adapter_forward.1} parent=5 // pred_fallthru
      _
    %p174 = scmp.lt.s32.totalorder %s11, 8
    // Predicated region
    $region29: #{adapter_forward.1} parent=5 // pred_check
      %p175 = pneg %p174
    $region30: #{adapter_forward.1} parent=5 // pred_check_branch
      %177 = sbr.rel (%p175) target = $region32
    $region31: #{adapter_forward.1} parent=5 // pred_region
      // Predicated region
      $region33: #{adapter_forward.1} parent=31 // pred_check
        %p178 = pneg %p31
      $region34: #{adapter_forward.1} parent=31 // pred_check_branch
        %180 = sbr.rel (%p178) target = $region36
      $region35: #{adapter_forward.1} parent=31 // pred_region
        %p181 = scmp.lt.s32.totalorder %s11, 7
        %s182 = scalar_select %p181, %s11, 7
        %s183 = smul.addr %s182, 2
        %s184 = smul.addr %s183, 8
        %s185 = scalar_lea.vmem %s0, %s184
      $region36: #{adapter_forward.1} parent=31 // pred_fallthru
        _
    $region32: #{adapter_forward.1} parent=5 // pred_fallthru
      _
    %p186 = scmp.le.s32.totalorder 1, %s11
    %p187 = scmp.lt.s32.totalorder %s11, 9
    %p188 = pnand %p186, %p187
    %p189 = pneg %p188
    // Predicated region
    $region37: #{adapter_forward.1} parent=5 // pred_check
      _
    $region38: #{adapter_forward.1} parent=5 // pred_check_branch
      %191 = sbr.rel (%p188) target = $region40
    $region39: #{adapter_forward.1} parent=5 // pred_region
      %s192 = ssub.s32 %s11, 1
      %p193 = scmp.lt.s32.totalorder %s16, 7
      %s194 = scalar_select %p193, %s16, 7
      %s195 = smul.addr %s194, 2
      %s196 = smul.addr %s195, 8
      %s197 = scalar_lea.vmem %s0, %s196
      %p198 = pneg %p37
      %p199 = pneg %p34
      %p200 = pneg %p58
      %p201 = pneg %p55
      %p202 = pneg %p79
      %p203 = pneg %p76
      %p204 = pneg %p100
      %p205 = pneg %p97
      %p206 = pneg %p121
      %p207 = pneg %p118
      %p208 = pneg %p147
      %p209 = pneg %p144
      %p210 = scmp.lt.s32.totalorder %s16, 7
      %s211 = scalar_select %p210, %s16, 7
      %s212 = smul.addr %s211, 8
      %s213 = scalar_lea.vmem %s5, %s212
      %p214 = scmp.lt.s32.totalorder %s16, 7
      %s215 = scalar_select %p214, %s16, 7
      %s216 = smul.addr %s215, 2
      %s217 = smul.addr %s216, 8
      %s218 = scalar_lea.vmem %s0, %s217
      %p219 = scmp.lt.s32.totalorder %s16, 7
      %s220 = scalar_select %p219, %s16, 7
      %s221 = smul.addr %s220, 8
      %s222 = scalar_lea.vmem %s5, %s221
      %v223 = vld [vmem:[%s1] sm:$0xff]
      %v224 = vld [vmem:[%s1 + $0x8] sm:$0xff]
      %v225 = vld [vmem:[%s1 + $0x10] sm:$0xff]
      %v226 = vld [vmem:[%s1 + $0x18] sm:$0xff]
      %v227 = vld [vmem:[%s3] sm:$0xff]
      %v228 = vld [vmem:[%s3 + $0x8] sm:$0xff]
      %v229 = vld [vmem:[%s3 + $0x10] sm:$0xff]
      %v230 = vld [vmem:[%s3 + $0x18] sm:$0xff]
      %v231 = vld [vmem:[%s3 + $0x20] sm:$0xff]
      %v232 = vld [vmem:[%s3 + $0x28] sm:$0xff]
      %v233 = vld [vmem:[%s3 + $0x30] sm:$0xff]
      %v234 = vld [vmem:[%s3 + $0x38] sm:$0xff]
      %v235 = vld [vmem:[%s2] sm:$0x1]
      %v236 = vld [vmem:[%s4] sm:$0x1]
      %v237 = vld [vmem:[%s218] sm:$0xff]
      %v239 = vlaneseq
      %v240 = vshrl.u32 %v239, 7
      %v241 = vsub.s32 0, %v240
      %v242 = vrot.slane %v235, %v241
      %vm244 = vcmask 261120
      %v246 = vsel %vm244, %v237, 0
      %248 = vmatprep.subr.mxu0 0.0
      %249 = vmatpush1.msra.mxu0 0.0
      %250 = vmatprep.subr.mxu0 0.0
      %251 = vmatpush1.msra.mxu0 0.0
      %252 = vmatprep.subr.mxu0 0.0
      %253 = vmatpush1.msra.mxu0 0.0
      %254 = vmatprep.subr.mxu0 0.0
      %255 = vmatpush1.msra.mxu0 0.0
      %256 = vmatprep.subr.mxu0 0.0
      %257 = vmatpush1.msra.mxu0 0.0
      %258 = vmatprep.subr.mxu0 0.0
      %259 = vmatpush1.msra.mxu0 0.0
      %260 = vmatprep.subr.mxu0 0.0
      %261 = vmatpush1.msra.mxu0 0.0
      %262 = vmatprep.subr.mxu0 0.0
      %263 = vmatpush1.msra.mxu0 0.0
      %264 = vmatprep.subr.mxu0 0.0
      %265 = vmatpush1.msra.mxu0 0.0
      %266 = vmatprep.subr.mxu0 0.0
      %267 = vmatpush1.msra.mxu0 0.0
      %268 = vmatprep.subr.mxu0 0.0
      %269 = vmatpush1.msra.mxu0 0.0
      %270 = vmatprep.subr.mxu0 0.0
      %271 = vmatpush1.msra.mxu0 0.0
      %272 = vmatprep.subr.mxu0 0.0
      %273 = vmatpush1.msra.mxu0 %v226
      %274 = vmatprep.subr.mxu0 0.0
      %275 = vmatpush1.msra.mxu0 %v225
      %276 = vmatprep.subr.mxu0 0.0
      %277 = vmatpush1.msra.mxu0 %v224
      %278 = vmatprep.subr.mxu0 0.0
      %279 = vmatpush1.msra.mxu0 %v223
      %280 = vmatprep.subr.mxu0 0.0
      %281 = vmatpush2.msra.mxu0 0.0
      %282 = vmatprep.subr.mxu0 0.0
      %283 = vmatpush2.msra.mxu0 0.0
      %284 = vmatprep.subr.mxu0 0.0
      %285 = vmatpush2.msra.mxu0 0.0
      %286 = vmatprep.subr.mxu0 0.0
      %287 = vmatpush2.msra.mxu0 0.0
      %288 = vmatprep.subr.mxu0 0.0
      %289 = vmatpush2.msra.mxu0 0.0
      %290 = vmatprep.subr.mxu0 0.0
      %291 = vmatpush2.msra.mxu0 0.0
      %292 = vmatprep.subr.mxu0 0.0
      %293 = vmatpush2.msra.mxu0 0.0
      %294 = vmatprep.subr.mxu0 0.0
      %295 = vmatpush2.msra.mxu0 0.0
      %296 = vmatprep.subr.mxu0 0.0
      %297 = vmatpush2.msra.mxu0 0.0
      %298 = vmatprep.subr.mxu0 0.0
      %299 = vmatpush2.msra.mxu0 0.0
      %300 = vmatprep.subr.mxu0 0.0
      %301 = vmatpush2.msra.mxu0 0.0
      %302 = vmatprep.subr.mxu0 0.0
      %303 = vmatpush2.msra.mxu0 0.0
      %304 = vmatprep.subr.mxu0 0.0
      %305 = vmatpush2.msra.mxu0 0.0
      %306 = vmatprep.subr.mxu0 0.0
      %307 = vmatpush2.msra.mxu0 0.0
      %308 = vmatprep.subr.mxu0 0.0
      %309 = vmatpush2.msra.mxu0 0.0
      %310 = vmatprep.subr.mxu0 0.0
      %311 = vmatpush2.msra.mxu0 0.0
      %312 = vmatprep.mubr.f32.mxu0 0.0
      %313 = vmatmul.mubr.f32.gmra.mxu0 %v246
      %v314 = vpop.f32.mrf.mxu0
      %v315 = vadd.f32 %v242, %v314
      %v316 = vpop.f32.mrf.mxu0
      %317 = vdwg.mxu0
      %v318 = vmax.f32 %v315, 0.0
      %v320 = vlaneseq
      %v321 = vshrl.u32 %v320, 7
      %v322 = vsub.s32 0, %v321
      %v323 = vrot.slane %v236, %v322
      %vm325 = vcmask 523264
      %v327 = vsel %vm325, %v318, 0
      %329 = vmatprep.subr.mxu0 0.0
      %330 = vmatpush1.msra.mxu0 0.0
      %331 = vmatprep.subr.mxu0 0.0
      %332 = vmatpush1.msra.mxu0 0.0
      %333 = vmatprep.subr.mxu0 0.0
      %334 = vmatpush1.msra.mxu0 0.0
      %335 = vmatprep.subr.mxu0 0.0
      %336 = vmatpush1.msra.mxu0 0.0
      %337 = vmatprep.subr.mxu0 0.0
      %338 = vmatpush1.msra.mxu0 0.0
      %339 = vmatprep.subr.mxu0 0.0
      %340 = vmatpush1.msra.mxu0 0.0
      %341 = vmatprep.subr.mxu0 0.0
      %342 = vmatpush1.msra.mxu0 0.0
      %343 = vmatprep.subr.mxu0 0.0
      %344 = vmatpush1.msra.mxu0 0.0
      %345 = vmatprep.subr.mxu0 0.0
      %346 = vmatpush1.msra.mxu0 %v234
      %347 = vmatprep.subr.mxu0 0.0
      %348 = vmatpush1.msra.mxu0 %v233
      %349 = vmatprep.subr.mxu0 0.0
      %350 = vmatpush1.msra.mxu0 %v232
      %351 = vmatprep.subr.mxu0 0.0
      %352 = vmatpush1.msra.mxu0 %v231
      %353 = vmatprep.subr.mxu0 0.0
      %354 = vmatpush1.msra.mxu0 %v230
      %355 = vmatprep.subr.mxu0 0.0
      %356 = vmatpush1.msra.mxu0 %v229
      %357 = vmatprep.subr.mxu0 0.0
      %358 = vmatpush1.msra.mxu0 %v228
      %359 = vmatprep.subr.mxu0 0.0
      %360 = vmatpush1.msra.mxu0 %v227
      %361 = vmatprep.subr.mxu0 0.0
      %362 = vmatpush2.msra.mxu0 0.0
      %363 = vmatprep.subr.mxu0 0.0
      %364 = vmatpush2.msra.mxu0 0.0
      %365 = vmatprep.subr.mxu0 0.0
      %366 = vmatpush2.msra.mxu0 0.0
      %367 = vmatprep.subr.mxu0 0.0
      %368 = vmatpush2.msra.mxu0 0.0
      %369 = vmatprep.subr.mxu0 0.0
      %370 = vmatpush2.msra.mxu0 0.0
      %371 = vmatprep.subr.mxu0 0.0
      %372 = vmatpush2.msra.mxu0 0.0
      %373 = vmatprep.subr.mxu0 0.0
      %374 = vmatpush2.msra.mxu0 0.0
      %375 = vmatprep.subr.mxu0 0.0
      %376 = vmatpush2.msra.mxu0 0.0
      %377 = vmatprep.subr.mxu0 0.0
      %378 = vmatpush2.msra.mxu0 0.0
      %379 = vmatprep.subr.mxu0 0.0
      %380 = vmatpush2.msra.mxu0 0.0
      %381 = vmatprep.subr.mxu0 0.0
      %382 = vmatpush2.msra.mxu0 0.0
      %383 = vmatprep.subr.mxu0 0.0
      %384 = vmatpush2.msra.mxu0 0.0
      %385 = vmatprep.subr.mxu0 0.0
      %386 = vmatpush2.msra.mxu0 0.0
      %387 = vmatprep.subr.mxu0 0.0
      %388 = vmatpush2.msra.mxu0 0.0
      %389 = vmatprep.subr.mxu0 0.0
      %390 = vmatpush2.msra.mxu0 0.0
      %391 = vmatprep.subr.mxu0 0.0
      %392 = vmatpush2.msra.mxu0 0.0
      %393 = vmatprep.mubr.f32.mxu0 0.0
      %394 = vmatmul.mubr.f32.gmra.mxu0 %v327
      %v395 = vpop.f32.mrf.mxu0
      %v396 = vadd.f32 %v323, %v395
      %v397 = vpop.f32.mrf.mxu0
      %398 = vdwg.mxu0
      %v399 = vmax.f32 %v396, 0.0
      %vm400 = vcmask 130048
      %401 = vst.msk [vmem:[%s222] sm:$0xff] %vm400, %v399
      %v402 = vld [vmem:[%s218] sm:$0xff]
      %404 = vrot.lane.b32.xlu0 %v402, 96
      %v405 = vpop.permute.xlu0 %404
      %v406 = vsel %vm244, %v405, 0
      %408 = vmatprep.subr.mxu0 0.0
      %409 = vmatpush1.msra.mxu0 0.0
      %410 = vmatprep.subr.mxu0 0.0
      %411 = vmatpush1.msra.mxu0 0.0
      %412 = vmatprep.subr.mxu0 0.0
      %413 = vmatpush1.msra.mxu0 0.0
      %414 = vmatprep.subr.mxu0 0.0
      %415 = vmatpush1.msra.mxu0 0.0
      %416 = vmatprep.subr.mxu0 0.0
      %417 = vmatpush1.msra.mxu0 0.0
      %418 = vmatprep.subr.mxu0 0.0
      %419 = vmatpush1.msra.mxu0 0.0
      %420 = vmatprep.subr.mxu0 0.0
      %421 = vmatpush1.msra.mxu0 0.0
      %422 = vmatprep.subr.mxu0 0.0
      %423 = vmatpush1.msra.mxu0 0.0
      %424 = vmatprep.subr.mxu0 0.0
      %425 = vmatpush1.msra.mxu0 0.0
      %426 = vmatprep.subr.mxu0 0.0
      %427 = vmatpush1.msra.mxu0 0.0
      %428 = vmatprep.subr.mxu0 0.0
      %429 = vmatpush1.msra.mxu0 0.0
      %430 = vmatprep.subr.mxu0 0.0
      %431 = vmatpush1.msra.mxu0 0.0
      %432 = vmatprep.subr.mxu0 0.0
      %433 = vmatpush1.msra.mxu0 %v226
      %434 = vmatprep.subr.mxu0 0.0
      %435 = vmatpush1.msra.mxu0 %v225
      %436 = vmatprep.subr.mxu0 0.0
      %437 = vmatpush1.msra.mxu0 %v224
      %438 = vmatprep.subr.mxu0 0.0
      %439 = vmatpush1.msra.mxu0 %v223
      %440 = vmatprep.subr.mxu0 0.0
      %441 = vmatpush2.msra.mxu0 0.0
      %442 = vmatprep.subr.mxu0 0.0
      %443 = vmatpush2.msra.mxu0 0.0
      %444 = vmatprep.subr.mxu0 0.0
      %445 = vmatpush2.msra.mxu0 0.0
      %446 = vmatprep.subr.mxu0 0.0
      %447 = vmatpush2.msra.mxu0 0.0
      %448 = vmatprep.subr.mxu0 0.0
      %449 = vmatpush2.msra.mxu0 0.0
      %450 = vmatprep.subr.mxu0 0.0
      %451 = vmatpush2.msra.mxu0 0.0
      %452 = vmatprep.subr.mxu0 0.0
      %453 = vmatpush2.msra.mxu0 0.0
      %454 = vmatprep.subr.mxu0 0.0
      %455 = vmatpush2.msra.mxu0 0.0
      %456 = vmatprep.subr.mxu0 0.0
      %457 = vmatpush2.msra.mxu0 0.0
      %458 = vmatprep.subr.mxu0 0.0
      %459 = vmatpush2.msra.mxu0 0.0
      %460 = vmatprep.subr.mxu0 0.0
      %461 = vmatpush2.msra.mxu0 0.0
      %462 = vmatprep.subr.mxu0 0.0
      %463 = vmatpush2.msra.mxu0 0.0
      %464 = vmatprep.subr.mxu0 0.0
      %465 = vmatpush2.msra.mxu0 0.0
      %466 = vmatprep.subr.mxu0 0.0
      %467 = vmatpush2.msra.mxu0 0.0
      %468 = vmatprep.subr.mxu0 0.0
      %469 = vmatpush2.msra.mxu0 0.0
      %470 = vmatprep.subr.mxu0 0.0
      %471 = vmatpush2.msra.mxu0 0.0
      %472 = vmatprep.mubr.f32.mxu0 0.0
      %473 = vmatmul.mubr.f32.gmra.mxu0 %v406
      %v474 = vpop.f32.mrf.mxu0
      %v475 = vadd.f32 %v242, %v474
      %v476 = vpop.f32.mrf.mxu0
      %477 = vdwg.mxu0
      %v478 = vmax.f32 %v475, 0.0
      %v480 = vsel %vm325, %v478, 0
      %482 = vmatprep.subr.mxu0 0.0
      %483 = vmatpush1.msra.mxu0 0.0
      %484 = vmatprep.subr.mxu0 0.0
      %485 = vmatpush1.msra.mxu0 0.0
      %486 = vmatprep.subr.mxu0 0.0
      %487 = vmatpush1.msra.mxu0 0.0
      %488 = vmatprep.subr.mxu0 0.0
      %489 = vmatpush1.msra.mxu0 0.0
      %490 = vmatprep.subr.mxu0 0.0
      %491 = vmatpush1.msra.mxu0 0.0
      %492 = vmatprep.subr.mxu0 0.0
      %493 = vmatpush1.msra.mxu0 0.0
      %494 = vmatprep.subr.mxu0 0.0
      %495 = vmatpush1.msra.mxu0 0.0
      %496 = vmatprep.subr.mxu0 0.0
      %497 = vmatpush1.msra.mxu0 0.0
      %498 = vmatprep.subr.mxu0 0.0
      %499 = vmatpush1.msra.mxu0 %v234
      %500 = vmatprep.subr.mxu0 0.0
      %501 = vmatpush1.msra.mxu0 %v233
      %502 = vmatprep.subr.mxu0 0.0
      %503 = vmatpush1.msra.mxu0 %v232
      %504 = vmatprep.subr.mxu0 0.0
      %505 = vmatpush1.msra.mxu0 %v231
      %506 = vmatprep.subr.mxu0 0.0
      %507 = vmatpush1.msra.mxu0 %v230
      %508 = vmatprep.subr.mxu0 0.0
      %509 = vmatpush1.msra.mxu0 %v229
      %510 = vmatprep.subr.mxu0 0.0
      %511 = vmatpush1.msra.mxu0 %v228
      %512 = vmatprep.subr.mxu0 0.0
      %513 = vmatpush1.msra.mxu0 %v227
      %514 = vmatprep.subr.mxu0 0.0
      %515 = vmatpush2.msra.mxu0 0.0
      %516 = vmatprep.subr.mxu0 0.0
      %517 = vmatpush2.msra.mxu0 0.0
      %518 = vmatprep.subr.mxu0 0.0
      %519 = vmatpush2.msra.mxu0 0.0
      %520 = vmatprep.subr.mxu0 0.0
      %521 = vmatpush2.msra.mxu0 0.0
      %522 = vmatprep.subr.mxu0 0.0
      %523 = vmatpush2.msra.mxu0 0.0
      %524 = vmatprep.subr.mxu0 0.0
      %525 = vmatpush2.msra.mxu0 0.0
      %526 = vmatprep.subr.mxu0 0.0
      %527 = vmatpush2.msra.mxu0 0.0
      %528 = vmatprep.subr.mxu0 0.0
      %529 = vmatpush2.msra.mxu0 0.0
      %530 = vmatprep.subr.mxu0 0.0
      %531 = vmatpush2.msra.mxu0 0.0
      %532 = vmatprep.subr.mxu0 0.0
      %533 = vmatpush2.msra.mxu0 0.0
      %534 = vmatprep.subr.mxu0 0.0
      %535 = vmatpush2.msra.mxu0 0.0
      %536 = vmatprep.subr.mxu0 0.0
      %537 = vmatpush2.msra.mxu0 0.0
      %538 = vmatprep.subr.mxu0 0.0
      %539 = vmatpush2.msra.mxu0 0.0
      %540 = vmatprep.subr.mxu0 0.0
      %541 = vmatpush2.msra.mxu0 0.0
      %542 = vmatprep.subr.mxu0 0.0
      %543 = vmatpush2.msra.mxu0 0.0
      %544 = vmatprep.subr.mxu0 0.0
      %545 = vmatpush2.msra.mxu0 0.0
      %546 = vmatprep.mubr.f32.mxu0 0.0
      %547 = vmatmul.mubr.f32.gmra.mxu0 %v480
      %v548 = vpop.f32.mrf.mxu0
      %v549 = vadd.f32 %v323, %v548
      %v550 = vpop.f32.mrf.mxu0
      %551 = vdwg.mxu0
      %v552 = vmax.f32 %v549, 0.0
      %554 = vrot.lane.b32.xlu0 %v552, 16
      %v555 = vpop.permute.xlu0 %554
      %vm557 = vcmask 261248
      %558 = vst.msk [vmem:[%s222] sm:$0xff] %vm557, %v555
      %v559 = vld [vmem:[%s218] sm:$0xff]
      %561 = vrot.lane.b32.xlu0 %v559, 64
      %v562 = vpop.permute.xlu0 %561
      %v563 = vsel %vm244, %v562, 0
      %565 = vmatprep.subr.mxu0 0.0
      %566 = vmatpush1.msra.mxu0 0.0
      %567 = vmatprep.subr.mxu0 0.0
      %568 = vmatpush1.msra.mxu0 0.0
      %569 = vmatprep.subr.mxu0 0.0
      %570 = vmatpush1.msra.mxu0 0.0
      %571 = vmatprep.subr.mxu0 0.0
      %572 = vmatpush1.msra.mxu0 0.0
      %573 = vmatprep.subr.mxu0 0.0
      %574 = vmatpush1.msra.mxu0 0.0
      %575 = vmatprep.subr.mxu0 0.0
      %576 = vmatpush1.msra.mxu0 0.0
      %577 = vmatprep.subr.mxu0 0.0
      %578 = vmatpush1.msra.mxu0 0.0
      %579 = vmatprep.subr.mxu0 0.0
      %580 = vmatpush1.msra.mxu0 0.0
      %581 = vmatprep.subr.mxu0 0.0
      %582 = vmatpush1.msra.mxu0 0.0
      %583 = vmatprep.subr.mxu0 0.0
      %584 = vmatpush1.msra.mxu0 0.0
      %585 = vmatprep.subr.mxu0 0.0
      %586 = vmatpush1.msra.mxu0 0.0
      %587 = vmatprep.subr.mxu0 0.0
      %588 = vmatpush1.msra.mxu0 0.0
      %589 = vmatprep.subr.mxu0 0.0
      %590 = vmatpush1.msra.mxu0 %v226
      %591 = vmatprep.subr.mxu0 0.0
      %592 = vmatpush1.msra.mxu0 %v225
      %593 = vmatprep.subr.mxu0 0.0
      %594 = vmatpush1.msra.mxu0 %v224
      %595 = vmatprep.subr.mxu0 0.0
      %596 = vmatpush1.msra.mxu0 %v223
      %597 = vmatprep.subr.mxu0 0.0
      %598 = vmatpush2.msra.mxu0 0.0
      %599 = vmatprep.subr.mxu0 0.0
      %600 = vmatpush2.msra.mxu0 0.0
      %601 = vmatprep.subr.mxu0 0.0
      %602 = vmatpush2.msra.mxu0 0.0
      %603 = vmatprep.subr.mxu0 0.0
      %604 = vmatpush2.msra.mxu0 0.0
      %605 = vmatprep.subr.mxu0 0.0
      %606 = vmatpush2.msra.mxu0 0.0
      %607 = vmatprep.subr.mxu0 0.0
      %608 = vmatpush2.msra.mxu0 0.0
      %609 = vmatprep.subr.mxu0 0.0
      %610 = vmatpush2.msra.mxu0 0.0
      %611 = vmatprep.subr.mxu0 0.0
      %612 = vmatpush2.msra.mxu0 0.0
      %613 = vmatprep.subr.mxu0 0.0
      %614 = vmatpush2.msra.mxu0 0.0
      %615 = vmatprep.subr.mxu0 0.0
      %616 = vmatpush2.msra.mxu0 0.0
      %617 = vmatprep.subr.mxu0 0.0
      %618 = vmatpush2.msra.mxu0 0.0
      %619 = vmatprep.subr.mxu0 0.0
      %620 = vmatpush2.msra.mxu0 0.0
      %621 = vmatprep.subr.mxu0 0.0
      %622 = vmatpush2.msra.mxu0 0.0
      %623 = vmatprep.subr.mxu0 0.0
      %624 = vmatpush2.msra.mxu0 0.0
      %625 = vmatprep.subr.mxu0 0.0
      %626 = vmatpush2.msra.mxu0 0.0
      %627 = vmatprep.subr.mxu0 0.0
      %628 = vmatpush2.msra.mxu0 0.0
      %629 = vmatprep.mubr.f32.mxu0 0.0
      %630 = vmatmul.mubr.f32.gmra.mxu0 %v563
      %v631 = vpop.f32.mrf.mxu0
      %v632 = vadd.f32 %v242, %v631
      %v633 = vpop.f32.mrf.mxu0
      %634 = vdwg.mxu0
      %v635 = vmax.f32 %v632, 0.0
      %v637 = vsel %vm325, %v635, 0
      %639 = vmatprep.subr.mxu0 0.0
      %640 = vmatpush1.msra.mxu0 0.0
      %641 = vmatprep.subr.mxu0 0.0
      %642 = vmatpush1.msra.mxu0 0.0
      %643 = vmatprep.subr.mxu0 0.0
      %644 = vmatpush1.msra.mxu0 0.0
      %645 = vmatprep.subr.mxu0 0.0
      %646 = vmatpush1.msra.mxu0 0.0
      %647 = vmatprep.subr.mxu0 0.0
      %648 = vmatpush1.msra.mxu0 0.0
      %649 = vmatprep.subr.mxu0 0.0
      %650 = vmatpush1.msra.mxu0 0.0
      %651 = vmatprep.subr.mxu0 0.0
      %652 = vmatpush1.msra.mxu0 0.0
      %653 = vmatprep.subr.mxu0 0.0
      %654 = vmatpush1.msra.mxu0 0.0
      %655 = vmatprep.subr.mxu0 0.0
      %656 = vmatpush1.msra.mxu0 %v234
      %657 = vmatprep.subr.mxu0 0.0
      %658 = vmatpush1.msra.mxu0 %v233
      %659 = vmatprep.subr.mxu0 0.0
      %660 = vmatpush1.msra.mxu0 %v232
      %661 = vmatprep.subr.mxu0 0.0
      %662 = vmatpush1.msra.mxu0 %v231
      %663 = vmatprep.subr.mxu0 0.0
      %664 = vmatpush1.msra.mxu0 %v230
      %665 = vmatprep.subr.mxu0 0.0
      %666 = vmatpush1.msra.mxu0 %v229
      %667 = vmatprep.subr.mxu0 0.0
      %668 = vmatpush1.msra.mxu0 %v228
      %669 = vmatprep.subr.mxu0 0.0
      %670 = vmatpush1.msra.mxu0 %v227
      %671 = vmatprep.subr.mxu0 0.0
      %672 = vmatpush2.msra.mxu0 0.0
      %673 = vmatprep.subr.mxu0 0.0
      %674 = vmatpush2.msra.mxu0 0.0
      %675 = vmatprep.subr.mxu0 0.0
      %676 = vmatpush2.msra.mxu0 0.0
      %677 = vmatprep.subr.mxu0 0.0
      %678 = vmatpush2.msra.mxu0 0.0
      %679 = vmatprep.subr.mxu0 0.0
      %680 = vmatpush2.msra.mxu0 0.0
      %681 = vmatprep.subr.mxu0 0.0
      %682 = vmatpush2.msra.mxu0 0.0
      %683 = vmatprep.subr.mxu0 0.0
      %684 = vmatpush2.msra.mxu0 0.0
      %685 = vmatprep.subr.mxu0 0.0
      %686 = vmatpush2.msra.mxu0 0.0
      %687 = vmatprep.subr.mxu0 0.0
      %688 = vmatpush2.msra.mxu0 0.0
      %689 = vmatprep.subr.mxu0 0.0
      %690 = vmatpush2.msra.mxu0 0.0
      %691 = vmatprep.subr.mxu0 0.0
      %692 = vmatpush2.msra.mxu0 0.0
      %693 = vmatprep.subr.mxu0 0.0
      %694 = vmatpush2.msra.mxu0 0.0
      %695 = vmatprep.subr.mxu0 0.0
      %696 = vmatpush2.msra.mxu0 0.0
      %697 = vmatprep.subr.mxu0 0.0
      %698 = vmatpush2.msra.mxu0 0.0
      %699 = vmatprep.subr.mxu0 0.0
      %700 = vmatpush2.msra.mxu0 0.0
      %701 = vmatprep.subr.mxu0 0.0
      %702 = vmatpush2.msra.mxu0 0.0
      %703 = vmatprep.mubr.f32.mxu0 0.0
      %704 = vmatmul.mubr.f32.gmra.mxu0 %v637
      %v705 = vpop.f32.mrf.mxu0
      %v706 = vadd.f32 %v323, %v705
      %v707 = vpop.f32.mrf.mxu0
      %708 = vdwg.mxu0
      %v709 = vmax.f32 %v706, 0.0
      %711 = vrot.lane.b32.xlu0 %v709, 32
      %v712 = vpop.permute.xlu0 %711
      %vm714 = vcmask 392448
      %715 = vst.msk [vmem:[%s222] sm:$0xff] %vm714, %v712
      %v716 = vld [vmem:[%s218] sm:$0xff]
      %718 = vrot.lane.b32.xlu0 %v716, 32
      %v719 = vpop.permute.xlu0 %718
      %v720 = vsel %vm244, %v719, 0
      %722 = vmatprep.subr.mxu0 0.0
      %723 = vmatpush1.msra.mxu0 0.0
      %724 = vmatprep.subr.mxu0 0.0
      %725 = vmatpush1.msra.mxu0 0.0
      %726 = vmatprep.subr.mxu0 0.0
      %727 = vmatpush1.msra.mxu0 0.0
      %728 = vmatprep.subr.mxu0 0.0
      %729 = vmatpush1.msra.mxu0 0.0
      %730 = vmatprep.subr.mxu0 0.0
      %731 = vmatpush1.msra.mxu0 0.0
      %732 = vmatprep.subr.mxu0 0.0
      %733 = vmatpush1.msra.mxu0 0.0
      %734 = vmatprep.subr.mxu0 0.0
      %735 = vmatpush1.msra.mxu0 0.0
      %736 = vmatprep.subr.mxu0 0.0
      %737 = vmatpush1.msra.mxu0 0.0
      %738 = vmatprep.subr.mxu0 0.0
      %739 = vmatpush1.msra.mxu0 0.0
      %740 = vmatprep.subr.mxu0 0.0
      %741 = vmatpush1.msra.mxu0 0.0
      %742 = vmatprep.subr.mxu0 0.0
      %743 = vmatpush1.msra.mxu0 0.0
      %744 = vmatprep.subr.mxu0 0.0
      %745 = vmatpush1.msra.mxu0 0.0
      %746 = vmatprep.subr.mxu0 0.0
      %747 = vmatpush1.msra.mxu0 %v226
      %748 = vmatprep.subr.mxu0 0.0
      %749 = vmatpush1.msra.mxu0 %v225
      %750 = vmatprep.subr.mxu0 0.0
      %751 = vmatpush1.msra.mxu0 %v224
      %752 = vmatprep.subr.mxu0 0.0
      %753 = vmatpush1.msra.mxu0 %v223
      %754 = vmatprep.subr.mxu0 0.0
      %755 = vmatpush2.msra.mxu0 0.0
      %756 = vmatprep.subr.mxu0 0.0
      %757 = vmatpush2.msra.mxu0 0.0
      %758 = vmatprep.subr.mxu0 0.0
      %759 = vmatpush2.msra.mxu0 0.0
      %760 = vmatprep.subr.mxu0 0.0
      %761 = vmatpush2.msra.mxu0 0.0
      %762 = vmatprep.subr.mxu0 0.0
      %763 = vmatpush2.msra.mxu0 0.0
      %764 = vmatprep.subr.mxu0 0.0
      %765 = vmatpush2.msra.mxu0 0.0
      %766 = vmatprep.subr.mxu0 0.0
      %767 = vmatpush2.msra.mxu0 0.0
      %768 = vmatprep.subr.mxu0 0.0
      %769 = vmatpush2.msra.mxu0 0.0
      %770 = vmatprep.subr.mxu0 0.0
      %771 = vmatpush2.msra.mxu0 0.0
      %772 = vmatprep.subr.mxu0 0.0
      %773 = vmatpush2.msra.mxu0 0.0
      %774 = vmatprep.subr.mxu0 0.0
      %775 = vmatpush2.msra.mxu0 0.0
      %776 = vmatprep.subr.mxu0 0.0
      %777 = vmatpush2.msra.mxu0 0.0
      %778 = vmatprep.subr.mxu0 0.0
      %779 = vmatpush2.msra.mxu0 0.0
      %780 = vmatprep.subr.mxu0 0.0
      %781 = vmatpush2.msra.mxu0 0.0
      %782 = vmatprep.subr.mxu0 0.0
      %783 = vmatpush2.msra.mxu0 0.0
      %784 = vmatprep.subr.mxu0 0.0
      %785 = vmatpush2.msra.mxu0 0.0
      %786 = vmatprep.mubr.f32.mxu0 0.0
      %787 = vmatmul.mubr.f32.gmra.mxu0 %v720
      %v788 = vpop.f32.mrf.mxu0
      %v789 = vadd.f32 %v242, %v788
      %v790 = vpop.f32.mrf.mxu0
      %791 = vdwg.mxu0
      %v792 = vmax.f32 %v789, 0.0
      %v794 = vsel %vm325, %v792, 0
      %796 = vmatprep.subr.mxu0 0.0
      %797 = vmatpush1.msra.mxu0 0.0
      %798 = vmatprep.subr.mxu0 0.0
      %799 = vmatpush1.msra.mxu0 0.0
      %800 = vmatprep.subr.mxu0 0.0
      %801 = vmatpush1.msra.mxu0 0.0
      %802 = vmatprep.subr.mxu0 0.0
      %803 = vmatpush1.msra.mxu0 0.0
      %804 = vmatprep.subr.mxu0 0.0
      %805 = vmatpush1.msra.mxu0 0.0
      %806 = vmatprep.subr.mxu0 0.0
      %807 = vmatpush1.msra.mxu0 0.0
      %808 = vmatprep.subr.mxu0 0.0
      %809 = vmatpush1.msra.mxu0 0.0
      %810 = vmatprep.subr.mxu0 0.0
      %811 = vmatpush1.msra.mxu0 0.0
      %812 = vmatprep.subr.mxu0 0.0
      %813 = vmatpush1.msra.mxu0 %v234
      %814 = vmatprep.subr.mxu0 0.0
      %815 = vmatpush1.msra.mxu0 %v233
      %816 = vmatprep.subr.mxu0 0.0
      %817 = vmatpush1.msra.mxu0 %v232
      %818 = vmatprep.subr.mxu0 0.0
      %819 = vmatpush1.msra.mxu0 %v231
      %820 = vmatprep.subr.mxu0 0.0
      %821 = vmatpush1.msra.mxu0 %v230
      %822 = vmatprep.subr.mxu0 0.0
      %823 = vmatpush1.msra.mxu0 %v229
      %824 = vmatprep.subr.mxu0 0.0
      %825 = vmatpush1.msra.mxu0 %v228
      %826 = vmatprep.subr.mxu0 0.0
      %827 = vmatpush1.msra.mxu0 %v227
      %828 = vmatprep.subr.mxu0 0.0
      %829 = vmatpush2.msra.mxu0 0.0
      %830 = vmatprep.subr.mxu0 0.0
      %831 = vmatpush2.msra.mxu0 0.0
      %832 = vmatprep.subr.mxu0 0.0
      %833 = vmatpush2.msra.mxu0 0.0
      %834 = vmatprep.subr.mxu0 0.0
      %835 = vmatpush2.msra.mxu0 0.0
      %836 = vmatprep.subr.mxu0 0.0
      %837 = vmatpush2.msra.mxu0 0.0
      %838 = vmatprep.subr.mxu0 0.0
      %839 = vmatpush2.msra.mxu0 0.0
      %840 = vmatprep.subr.mxu0 0.0
      %841 = vmatpush2.msra.mxu0 0.0
      %842 = vmatprep.subr.mxu0 0.0
      %843 = vmatpush2.msra.mxu0 0.0
      %844 = vmatprep.subr.mxu0 0.0
      %845 = vmatpush2.msra.mxu0 0.0
      %846 = vmatprep.subr.mxu0 0.0
      %847 = vmatpush2.msra.mxu0 0.0
      %848 = vmatprep.subr.mxu0 0.0
      %849 = vmatpush2.msra.mxu0 0.0
      %850 = vmatprep.subr.mxu0 0.0
      %851 = vmatpush2.msra.mxu0 0.0
      %852 = vmatprep.subr.mxu0 0.0
      %853 = vmatpush2.msra.mxu0 0.0
      %854 = vmatprep.subr.mxu0 0.0
      %855 = vmatpush2.msra.mxu0 0.0
      %856 = vmatprep.subr.mxu0 0.0
      %857 = vmatpush2.msra.mxu0 0.0
      %858 = vmatprep.subr.mxu0 0.0
      %859 = vmatpush2.msra.mxu0 0.0
      %860 = vmatprep.mubr.f32.mxu0 0.0
      %861 = vmatmul.mubr.f32.gmra.mxu0 %v794
      %v862 = vpop.f32.mrf.mxu0
      %v863 = vadd.f32 %v323, %v862
      %v864 = vpop.f32.mrf.mxu0
      %865 = vdwg.mxu0
      %v866 = vmax.f32 %v863, 0.0
      %868 = vrot.lane.b32.xlu0 %v866, 48
      %v869 = vpop.permute.xlu0 %868
      %vm871 = vcmask 523648
      %872 = vst.msk [vmem:[%s222] sm:$0xff] %vm871, %v869
      %v873 = vld [vmem:[%s218 + $0x8] sm:$0xff]
      %v875 = vsel %vm244, %v873, 0
      %877 = vmatprep.subr.mxu0 0.0
      %878 = vmatpush1.msra.mxu0 0.0
      %879 = vmatprep.subr.mxu0 0.0
      %880 = vmatpush1.msra.mxu0 0.0
      %881 = vmatprep.subr.mxu0 0.0
      %882 = vmatpush1.msra.mxu0 0.0
      %883 = vmatprep.subr.mxu0 0.0
      %884 = vmatpush1.msra.mxu0 0.0
      %885 = vmatprep.subr.mxu0 0.0
      %886 = vmatpush1.msra.mxu0 0.0
      %887 = vmatprep.subr.mxu0 0.0
      %888 = vmatpush1.msra.mxu0 0.0
      %889 = vmatprep.subr.mxu0 0.0
      %890 = vmatpush1.msra.mxu0 0.0
      %891 = vmatprep.subr.mxu0 0.0
      %892 = vmatpush1.msra.mxu0 0.0
      %893 = vmatprep.subr.mxu0 0.0
      %894 = vmatpush1.msra.mxu0 0.0
      %895 = vmatprep.subr.mxu0 0.0
      %896 = vmatpush1.msra.mxu0 0.0
      %897 = vmatprep.subr.mxu0 0.0
      %898 = vmatpush1.msra.mxu0 0.0
      %899 = vmatprep.subr.mxu0 0.0
      %900 = vmatpush1.msra.mxu0 0.0
      %901 = vmatprep.subr.mxu0 0.0
      %902 = vmatpush1.msra.mxu0 %v226
      %903 = vmatprep.subr.mxu0 0.0
      %904 = vmatpush1.msra.mxu0 %v225
      %905 = vmatprep.subr.mxu0 0.0
      %906 = vmatpush1.msra.mxu0 %v224
      %907 = vmatprep.subr.mxu0 0.0
      %908 = vmatpush1.msra.mxu0 %v223
      %909 = vmatprep.subr.mxu0 0.0
      %910 = vmatpush2.msra.mxu0 0.0
      %911 = vmatprep.subr.mxu0 0.0
      %912 = vmatpush2.msra.mxu0 0.0
      %913 = vmatprep.subr.mxu0 0.0
      %914 = vmatpush2.msra.mxu0 0.0
      %915 = vmatprep.subr.mxu0 0.0
      %916 = vmatpush2.msra.mxu0 0.0
      %917 = vmatprep.subr.mxu0 0.0
      %918 = vmatpush2.msra.mxu0 0.0
      %919 = vmatprep.subr.mxu0 0.0
      %920 = vmatpush2.msra.mxu0 0.0
      %921 = vmatprep.subr.mxu0 0.0
      %922 = vmatpush2.msra.mxu0 0.0
      %923 = vmatprep.subr.mxu0 0.0
      %924 = vmatpush2.msra.mxu0 0.0
      %925 = vmatprep.subr.mxu0 0.0
      %926 = vmatpush2.msra.mxu0 0.0
      %927 = vmatprep.subr.mxu0 0.0
      %928 = vmatpush2.msra.mxu0 0.0
      %929 = vmatprep.subr.mxu0 0.0
      %930 = vmatpush2.msra.mxu0 0.0
      %931 = vmatprep.subr.mxu0 0.0
      %932 = vmatpush2.msra.mxu0 0.0
      %933 = vmatprep.subr.mxu0 0.0
      %934 = vmatpush2.msra.mxu0 0.0
      %935 = vmatprep.subr.mxu0 0.0
      %936 = vmatpush2.msra.mxu0 0.0
      %937 = vmatprep.subr.mxu0 0.0
      %938 = vmatpush2.msra.mxu0 0.0
      %939 = vmatprep.subr.mxu0 0.0
      %940 = vmatpush2.msra.mxu0 0.0
      %941 = vmatprep.mubr.f32.mxu0 0.0
      %942 = vmatmul.mubr.f32.gmra.mxu0 %v875
      %v943 = vpop.f32.mrf.mxu0
      %v944 = vadd.f32 %v242, %v943
      %v945 = vpop.f32.mrf.mxu0
      %946 = vdwg.mxu0
      %v947 = vmax.f32 %v944, 0.0
      %v949 = vsel %vm325, %v947, 0
      %951 = vmatprep.subr.mxu0 0.0
      %952 = vmatpush1.msra.mxu0 0.0
      %953 = vmatprep.subr.mxu0 0.0
      %954 = vmatpush1.msra.mxu0 0.0
      %955 = vmatprep.subr.mxu0 0.0
      %956 = vmatpush1.msra.mxu0 0.0
      %957 = vmatprep.subr.mxu0 0.0
      %958 = vmatpush1.msra.mxu0 0.0
      %959 = vmatprep.subr.mxu0 0.0
      %960 = vmatpush1.msra.mxu0 0.0
      %961 = vmatprep.subr.mxu0 0.0
      %962 = vmatpush1.msra.mxu0 0.0
      %963 = vmatprep.subr.mxu0 0.0
      %964 = vmatpush1.msra.mxu0 0.0
      %965 = vmatprep.subr.mxu0 0.0
      %966 = vmatpush1.msra.mxu0 0.0
      %967 = vmatprep.subr.mxu0 0.0
      %968 = vmatpush1.msra.mxu0 %v234
      %969 = vmatprep.subr.mxu0 0.0
      %970 = vmatpush1.msra.mxu0 %v233
      %971 = vmatprep.subr.mxu0 0.0
      %972 = vmatpush1.msra.mxu0 %v232
      %973 = vmatprep.subr.mxu0 0.0
      %974 = vmatpush1.msra.mxu0 %v231
      %975 = vmatprep.subr.mxu0 0.0
      %976 = vmatpush1.msra.mxu0 %v230
      %977 = vmatprep.subr.mxu0 0.0
      %978 = vmatpush1.msra.mxu0 %v229
      %979 = vmatprep.subr.mxu0 0.0
      %980 = vmatpush1.msra.mxu0 %v228
      %981 = vmatprep.subr.mxu0 0.0
      %982 = vmatpush1.msra.mxu0 %v227
      %983 = vmatprep.subr.mxu0 0.0
      %984 = vmatpush2.msra.mxu0 0.0
      %985 = vmatprep.subr.mxu0 0.0
      %986 = vmatpush2.msra.mxu0 0.0
      %987 = vmatprep.subr.mxu0 0.0
      %988 = vmatpush2.msra.mxu0 0.0
      %989 = vmatprep.subr.mxu0 0.0
      %990 = vmatpush2.msra.mxu0 0.0
      %991 = vmatprep.subr.mxu0 0.0
      %992 = vmatpush2.msra.mxu0 0.0
      %993 = vmatprep.subr.mxu0 0.0
      %994 = vmatpush2.msra.mxu0 0.0
      %995 = vmatprep.subr.mxu0 0.0
      %996 = vmatpush2.msra.mxu0 0.0
      %997 = vmatprep.subr.mxu0 0.0
      %998 = vmatpush2.msra.mxu0 0.0
      %999 = vmatprep.subr.mxu0 0.0
      %1000 = vmatpush2.msra.mxu0 0.0
      %1001 = vmatprep.subr.mxu0 0.0
      %1002 = vmatpush2.msra.mxu0 0.0
      %1003 = vmatprep.subr.mxu0 0.0
      %1004 = vmatpush2.msra.mxu0 0.0
      %1005 = vmatprep.subr.mxu0 0.0
      %1006 = vmatpush2.msra.mxu0 0.0
      %1007 = vmatprep.subr.mxu0 0.0
      %1008 = vmatpush2.msra.mxu0 0.0
      %1009 = vmatprep.subr.mxu0 0.0
      %1010 = vmatpush2.msra.mxu0 0.0
      %1011 = vmatprep.subr.mxu0 0.0
      %1012 = vmatpush2.msra.mxu0 0.0
      %1013 = vmatprep.subr.mxu0 0.0
      %1014 = vmatpush2.msra.mxu0 0.0
      %1015 = vmatprep.mubr.f32.mxu0 0.0
      %1016 = vmatmul.mubr.f32.gmra.mxu0 %v949
      %v1017 = vpop.f32.mrf.mxu0
      %v1018 = vadd.f32 %v323, %v1017
      %v1019 = vpop.f32.mrf.mxu0
      %1020 = vdwg.mxu0
      %v1021 = vmax.f32 %v1018, 0.0
      %1023 = vrot.lane.b32.xlu0 %v1021, 64
      %v1024 = vpop.permute.xlu0 %1023
      %vm1026 = vcmask 654848
      %1027 = vst.msk [vmem:[%s222] sm:$0xff] %vm1026, %v1024
      %v1028 = vld [vmem:[%s218 + $0x8] sm:$0xff]
      %1030 = vrot.lane.b32.xlu0 %v1028, 96
      %v1031 = vpop.permute.xlu0 %1030
      %v1032 = vsel %vm244, %v1031, 0
      %1034 = vmatprep.subr.mxu0 0.0
      %1035 = vmatpush1.msra.mxu0 0.0
      %1036 = vmatprep.subr.mxu0 0.0
      %1037 = vmatpush1.msra.mxu0 0.0
      %1038 = vmatprep.subr.mxu0 0.0
      %1039 = vmatpush1.msra.mxu0 0.0
      %1040 = vmatprep.subr.mxu0 0.0
      %1041 = vmatpush1.msra.mxu0 0.0
      %1042 = vmatprep.subr.mxu0 0.0
      %1043 = vmatpush1.msra.mxu0 0.0
      %1044 = vmatprep.subr.mxu0 0.0
      %1045 = vmatpush1.msra.mxu0 0.0
      %1046 = vmatprep.subr.mxu0 0.0
      %1047 = vmatpush1.msra.mxu0 0.0
      %1048 = vmatprep.subr.mxu0 0.0
      %1049 = vmatpush1.msra.mxu0 0.0
      %1050 = vmatprep.subr.mxu0 0.0
      %1051 = vmatpush1.msra.mxu0 0.0
      %1052 = vmatprep.subr.mxu0 0.0
      %1053 = vmatpush1.msra.mxu0 0.0
      %1054 = vmatprep.subr.mxu0 0.0
      %1055 = vmatpush1.msra.mxu0 0.0
      %1056 = vmatprep.subr.mxu0 0.0
      %1057 = vmatpush1.msra.mxu0 0.0
      %1058 = vmatprep.subr.mxu0 0.0
      %1059 = vmatpush1.msra.mxu0 %v226
      %1060 = vmatprep.subr.mxu0 0.0
      %1061 = vmatpush1.msra.mxu0 %v225
      %1062 = vmatprep.subr.mxu0 0.0
      %1063 = vmatpush1.msra.mxu0 %v224
      %1064 = vmatprep.subr.mxu0 0.0
      %1065 = vmatpush1.msra.mxu0 %v223
      %1066 = vmatprep.subr.mxu0 0.0
      %1067 = vmatpush2.msra.mxu0 0.0
      %1068 = vmatprep.subr.mxu0 0.0
      %1069 = vmatpush2.msra.mxu0 0.0
      %1070 = vmatprep.subr.mxu0 0.0
      %1071 = vmatpush2.msra.mxu0 0.0
      %1072 = vmatprep.subr.mxu0 0.0
      %1073 = vmatpush2.msra.mxu0 0.0
      %1074 = vmatprep.subr.mxu0 0.0
      %1075 = vmatpush2.msra.mxu0 0.0
      %1076 = vmatprep.subr.mxu0 0.0
      %1077 = vmatpush2.msra.mxu0 0.0
      %1078 = vmatprep.subr.mxu0 0.0
      %1079 = vmatpush2.msra.mxu0 0.0
      %1080 = vmatprep.subr.mxu0 0.0
      %1081 = vmatpush2.msra.mxu0 0.0
      %1082 = vmatprep.subr.mxu0 0.0
      %1083 = vmatpush2.msra.mxu0 0.0
      %1084 = vmatprep.subr.mxu0 0.0
      %1085 = vmatpush2.msra.mxu0 0.0
      %1086 = vmatprep.subr.mxu0 0.0
      %1087 = vmatpush2.msra.mxu0 0.0
      %1088 = vmatprep.subr.mxu0 0.0
      %1089 = vmatpush2.msra.mxu0 0.0
      %1090 = vmatprep.subr.mxu0 0.0
      %1091 = vmatpush2.msra.mxu0 0.0
      %1092 = vmatprep.subr.mxu0 0.0
      %1093 = vmatpush2.msra.mxu0 0.0
      %1094 = vmatprep.subr.mxu0 0.0
      %1095 = vmatpush2.msra.mxu0 0.0
      %1096 = vmatprep.subr.mxu0 0.0
      %1097 = vmatpush2.msra.mxu0 0.0
      %1098 = vmatprep.mubr.f32.mxu0 0.0
      %1099 = vmatmul.mubr.f32.gmra.mxu0 %v1032
      %v1100 = vpop.f32.mrf.mxu0
      %v1101 = vadd.f32 %v242, %v1100
      %v1102 = vpop.f32.mrf.mxu0
      %1103 = vdwg.mxu0
      %v1104 = vmax.f32 %v1101, 0.0
      %v1106 = vsel %vm325, %v1104, 0
      %1108 = vmatprep.subr.mxu0 0.0
      %1109 = vmatpush1.msra.mxu0 0.0
      %1110 = vmatprep.subr.mxu0 0.0
      %1111 = vmatpush1.msra.mxu0 0.0
      %1112 = vmatprep.subr.mxu0 0.0
      %1113 = vmatpush1.msra.mxu0 0.0
      %1114 = vmatprep.subr.mxu0 0.0
      %1115 = vmatpush1.msra.mxu0 0.0
      %1116 = vmatprep.subr.mxu0 0.0
      %1117 = vmatpush1.msra.mxu0 0.0
      %1118 = vmatprep.subr.mxu0 0.0
      %1119 = vmatpush1.msra.mxu0 0.0
      %1120 = vmatprep.subr.mxu0 0.0
      %1121 = vmatpush1.msra.mxu0 0.0
      %1122 = vmatprep.subr.mxu0 0.0
      %1123 = vmatpush1.msra.mxu0 0.0
      %1124 = vmatprep.subr.mxu0 0.0
      %1125 = vmatpush1.msra.mxu0 %v234
      %1126 = vmatprep.subr.mxu0 0.0
      %1127 = vmatpush1.msra.mxu0 %v233
      %1128 = vmatprep.subr.mxu0 0.0
      %1129 = vmatpush1.msra.mxu0 %v232
      %1130 = vmatprep.subr.mxu0 0.0
      %1131 = vmatpush1.msra.mxu0 %v231
      %1132 = vmatprep.subr.mxu0 0.0
      %1133 = vmatpush1.msra.mxu0 %v230
      %1134 = vmatprep.subr.mxu0 0.0
      %1135 = vmatpush1.msra.mxu0 %v229
      %1136 = vmatprep.subr.mxu0 0.0
      %1137 = vmatpush1.msra.mxu0 %v228
      %1138 = vmatprep.subr.mxu0 0.0
      %1139 = vmatpush1.msra.mxu0 %v227
      %1140 = vmatprep.subr.mxu0 0.0
      %1141 = vmatpush2.msra.mxu0 0.0
      %1142 = vmatprep.subr.mxu0 0.0
      %1143 = vmatpush2.msra.mxu0 0.0
      %1144 = vmatprep.subr.mxu0 0.0
      %1145 = vmatpush2.msra.mxu0 0.0
      %1146 = vmatprep.subr.mxu0 0.0
      %1147 = vmatpush2.msra.mxu0 0.0
      %1148 = vmatprep.subr.mxu0 0.0
      %1149 = vmatpush2.msra.mxu0 0.0
      %1150 = vmatprep.subr.mxu0 0.0
      %1151 = vmatpush2.msra.mxu0 0.0
      %1152 = vmatprep.subr.mxu0 0.0
      %1153 = vmatpush2.msra.mxu0 0.0
      %1154 = vmatprep.subr.mxu0 0.0
      %1155 = vmatpush2.msra.mxu0 0.0
      %1156 = vmatprep.subr.mxu0 0.0
      %1157 = vmatpush2.msra.mxu0 0.0
      %1158 = vmatprep.subr.mxu0 0.0
      %1159 = vmatpush2.msra.mxu0 0.0
      %1160 = vmatprep.subr.mxu0 0.0
      %1161 = vmatpush2.msra.mxu0 0.0
      %1162 = vmatprep.subr.mxu0 0.0
      %1163 = vmatpush2.msra.mxu0 0.0
      %1164 = vmatprep.subr.mxu0 0.0
      %1165 = vmatpush2.msra.mxu0 0.0
      %1166 = vmatprep.subr.mxu0 0.0
      %1167 = vmatpush2.msra.mxu0 0.0
      %1168 = vmatprep.subr.mxu0 0.0
      %1169 = vmatpush2.msra.mxu0 0.0
      %1170 = vmatprep.subr.mxu0 0.0
      %1171 = vmatpush2.msra.mxu0 0.0
      %1172 = vmatprep.mubr.f32.mxu0 0.0
      %1173 = vmatmul.mubr.f32.gmra.mxu0 %v1106
      %v1174 = vpop.f32.mrf.mxu0
      %v1175 = vadd.f32 %v323, %v1174
      %v1176 = vpop.f32.mrf.mxu0
      %1177 = vdwg.mxu0
      %v1178 = vmax.f32 %v1175, 0.0
      %1180 = vrot.lane.b32.xlu0 %v1178, 80
      %v1181 = vpop.permute.xlu0 %1180
      %vm1183 = vcmask 786048
      %1184 = vst.msk [vmem:[%s222] sm:$0xff] %vm1183, %v1181
      %v1185 = vld [vmem:[%s218 + $0x8] sm:$0xff]
      %1187 = vrot.lane.b32.xlu0 %v1185, 64
      %v1188 = vpop.permute.xlu0 %1187
      %v1189 = vsel %vm244, %v1188, 0
      %1191 = vmatprep.subr.mxu0 0.0
      %1192 = vmatpush1.msra.mxu0 0.0
      %1193 = vmatprep.subr.mxu0 0.0
      %1194 = vmatpush1.msra.mxu0 0.0
      %1195 = vmatprep.subr.mxu0 0.0
      %1196 = vmatpush1.msra.mxu0 0.0
      %1197 = vmatprep.subr.mxu0 0.0
      %1198 = vmatpush1.msra.mxu0 0.0
      %1199 = vmatprep.subr.mxu0 0.0
      %1200 = vmatpush1.msra.mxu0 0.0
      %1201 = vmatprep.subr.mxu0 0.0
      %1202 = vmatpush1.msra.mxu0 0.0
      %1203 = vmatprep.subr.mxu0 0.0
      %1204 = vmatpush1.msra.mxu0 0.0
      %1205 = vmatprep.subr.mxu0 0.0
      %1206 = vmatpush1.msra.mxu0 0.0
      %1207 = vmatprep.subr.mxu0 0.0
      %1208 = vmatpush1.msra.mxu0 0.0
      %1209 = vmatprep.subr.mxu0 0.0
      %1210 = vmatpush1.msra.mxu0 0.0
      %1211 = vmatprep.subr.mxu0 0.0
      %1212 = vmatpush1.msra.mxu0 0.0
      %1213 = vmatprep.subr.mxu0 0.0
      %1214 = vmatpush1.msra.mxu0 0.0
      %1215 = vmatprep.subr.mxu0 0.0
      %1216 = vmatpush1.msra.mxu0 %v226
      %1217 = vmatprep.subr.mxu0 0.0
      %1218 = vmatpush1.msra.mxu0 %v225
      %1219 = vmatprep.subr.mxu0 0.0
      %1220 = vmatpush1.msra.mxu0 %v224
      %1221 = vmatprep.subr.mxu0 0.0
      %1222 = vmatpush1.msra.mxu0 %v223
      %1223 = vmatprep.subr.mxu0 0.0
      %1224 = vmatpush2.msra.mxu0 0.0
      %1225 = vmatprep.subr.mxu0 0.0
      %1226 = vmatpush2.msra.mxu0 0.0
      %1227 = vmatprep.subr.mxu0 0.0
      %1228 = vmatpush2.msra.mxu0 0.0
      %1229 = vmatprep.subr.mxu0 0.0
      %1230 = vmatpush2.msra.mxu0 0.0
      %1231 = vmatprep.subr.mxu0 0.0
      %1232 = vmatpush2.msra.mxu0 0.0
      %1233 = vmatprep.subr.mxu0 0.0
      %1234 = vmatpush2.msra.mxu0 0.0
      %1235 = vmatprep.subr.mxu0 0.0
      %1236 = vmatpush2.msra.mxu0 0.0
      %1237 = vmatprep.subr.mxu0 0.0
      %1238 = vmatpush2.msra.mxu0 0.0
      %1239 = vmatprep.subr.mxu0 0.0
      %1240 = vmatpush2.msra.mxu0 0.0
      %1241 = vmatprep.subr.mxu0 0.0
      %1242 = vmatpush2.msra.mxu0 0.0
      %1243 = vmatprep.subr.mxu0 0.0
      %1244 = vmatpush2.msra.mxu0 0.0
      %1245 = vmatprep.subr.mxu0 0.0
      %1246 = vmatpush2.msra.mxu0 0.0
      %1247 = vmatprep.subr.mxu0 0.0
      %1248 = vmatpush2.msra.mxu0 0.0
      %1249 = vmatprep.subr.mxu0 0.0
      %1250 = vmatpush2.msra.mxu0 0.0
      %1251 = vmatprep.subr.mxu0 0.0
      %1252 = vmatpush2.msra.mxu0 0.0
      %1253 = vmatprep.subr.mxu0 0.0
      %1254 = vmatpush2.msra.mxu0 0.0
      %1255 = vmatprep.mubr.f32.mxu0 0.0
      %1256 = vmatmul.mubr.f32.gmra.mxu0 %v1189
      %v1257 = vpop.f32.mrf.mxu0
      %v1258 = vadd.f32 %v242, %v1257
      %v1259 = vpop.f32.mrf.mxu0
      %1260 = vdwg.mxu0
      %v1261 = vmax.f32 %v1258, 0.0
      %v1263 = vsel %vm325, %v1261, 0
      %1265 = vmatprep.subr.mxu0 0.0
      %1266 = vmatpush1.msra.mxu0 0.0
      %1267 = vmatprep.subr.mxu0 0.0
      %1268 = vmatpush1.msra.mxu0 0.0
      %1269 = vmatprep.subr.mxu0 0.0
      %1270 = vmatpush1.msra.mxu0 0.0
      %1271 = vmatprep.subr.mxu0 0.0
      %1272 = vmatpush1.msra.mxu0 0.0
      %1273 = vmatprep.subr.mxu0 0.0
      %1274 = vmatpush1.msra.mxu0 0.0
      %1275 = vmatprep.subr.mxu0 0.0
      %1276 = vmatpush1.msra.mxu0 0.0
      %1277 = vmatprep.subr.mxu0 0.0
      %1278 = vmatpush1.msra.mxu0 0.0
      %1279 = vmatprep.subr.mxu0 0.0
      %1280 = vmatpush1.msra.mxu0 0.0
      %1281 = vmatprep.subr.mxu0 0.0
      %1282 = vmatpush1.msra.mxu0 %v234
      %1283 = vmatprep.subr.mxu0 0.0
      %1284 = vmatpush1.msra.mxu0 %v233
      %1285 = vmatprep.subr.mxu0 0.0
      %1286 = vmatpush1.msra.mxu0 %v232
      %1287 = vmatprep.subr.mxu0 0.0
      %1288 = vmatpush1.msra.mxu0 %v231
      %1289 = vmatprep.subr.mxu0 0.0
      %1290 = vmatpush1.msra.mxu0 %v230
      %1291 = vmatprep.subr.mxu0 0.0
      %1292 = vmatpush1.msra.mxu0 %v229
      %1293 = vmatprep.subr.mxu0 0.0
      %1294 = vmatpush1.msra.mxu0 %v228
      %1295 = vmatprep.subr.mxu0 0.0
      %1296 = vmatpush1.msra.mxu0 %v227
      %1297 = vmatprep.subr.mxu0 0.0
      %1298 = vmatpush2.msra.mxu0 0.0
      %1299 = vmatprep.subr.mxu0 0.0
      %1300 = vmatpush2.msra.mxu0 0.0
      %1301 = vmatprep.subr.mxu0 0.0
      %1302 = vmatpush2.msra.mxu0 0.0
      %1303 = vmatprep.subr.mxu0 0.0
      %1304 = vmatpush2.msra.mxu0 0.0
      %1305 = vmatprep.subr.mxu0 0.0
      %1306 = vmatpush2.msra.mxu0 0.0
      %1307 = vmatprep.subr.mxu0 0.0
      %1308 = vmatpush2.msra.mxu0 0.0
      %1309 = vmatprep.subr.mxu0 0.0
      %1310 = vmatpush2.msra.mxu0 0.0
      %1311 = vmatprep.subr.mxu0 0.0
      %1312 = vmatpush2.msra.mxu0 0.0
      %1313 = vmatprep.subr.mxu0 0.0
      %1314 = vmatpush2.msra.mxu0 0.0
      %1315 = vmatprep.subr.mxu0 0.0
      %1316 = vmatpush2.msra.mxu0 0.0
      %1317 = vmatprep.subr.mxu0 0.0
      %1318 = vmatpush2.msra.mxu0 0.0
      %1319 = vmatprep.subr.mxu0 0.0
      %1320 = vmatpush2.msra.mxu0 0.0
      %1321 = vmatprep.subr.mxu0 0.0
      %1322 = vmatpush2.msra.mxu0 0.0
      %1323 = vmatprep.subr.mxu0 0.0
      %1324 = vmatpush2.msra.mxu0 0.0
      %1325 = vmatprep.subr.mxu0 0.0
      %1326 = vmatpush2.msra.mxu0 0.0
      %1327 = vmatprep.subr.mxu0 0.0
      %1328 = vmatpush2.msra.mxu0 0.0
      %1329 = vmatprep.mubr.f32.mxu0 0.0
      %1330 = vmatmul.mubr.f32.gmra.mxu0 %v1263
      %v1331 = vpop.f32.mrf.mxu0
      %v1332 = vadd.f32 %v323, %v1331
      %v1333 = vpop.f32.mrf.mxu0
      %1334 = vdwg.mxu0
      %v1335 = vmax.f32 %v1332, 0.0
      %1337 = vrot.lane.b32.xlu0 %v1335, 96
      %v1338 = vpop.permute.xlu0 %1337
      %vm1340 = vcmask 917248
      %1341 = vst.msk [vmem:[%s222] sm:$0xff] %vm1340, %v1338
      %v1342 = vld [vmem:[%s218 + $0x8] sm:$0xff]
      %1344 = vrot.lane.b32.xlu0 %v1342, 32
      %v1345 = vpop.permute.xlu0 %1344
      %v1346 = vsel %vm244, %v1345, 0
      %1348 = vmatprep.subr.mxu0 0.0
      %1349 = vmatpush1.msra.mxu0 0.0
      %1350 = vmatprep.subr.mxu0 0.0
      %1351 = vmatpush1.msra.mxu0 0.0
      %1352 = vmatprep.subr.mxu0 0.0
      %1353 = vmatpush1.msra.mxu0 0.0
      %1354 = vmatprep.subr.mxu0 0.0
      %1355 = vmatpush1.msra.mxu0 0.0
      %1356 = vmatprep.subr.mxu0 0.0
      %1357 = vmatpush1.msra.mxu0 0.0
      %1358 = vmatprep.subr.mxu0 0.0
      %1359 = vmatpush1.msra.mxu0 0.0
      %1360 = vmatprep.subr.mxu0 0.0
      %1361 = vmatpush1.msra.mxu0 0.0
      %1362 = vmatprep.subr.mxu0 0.0
      %1363 = vmatpush1.msra.mxu0 0.0
      %1364 = vmatprep.subr.mxu0 0.0
      %1365 = vmatpush1.msra.mxu0 0.0
      %1366 = vmatprep.subr.mxu0 0.0
      %1367 = vmatpush1.msra.mxu0 0.0
      %1368 = vmatprep.subr.mxu0 0.0
      %1369 = vmatpush1.msra.mxu0 0.0
      %1370 = vmatprep.subr.mxu0 0.0
      %1371 = vmatpush1.msra.mxu0 0.0
      %1372 = vmatprep.subr.mxu0 0.0
      %1373 = vmatpush1.msra.mxu0 %v226
      %1374 = vmatprep.subr.mxu0 0.0
      %1375 = vmatpush1.msra.mxu0 %v225
      %1376 = vmatprep.subr.mxu0 0.0
      %1377 = vmatpush1.msra.mxu0 %v224
      %1378 = vmatprep.subr.mxu0 0.0
      %1379 = vmatpush1.msra.mxu0 %v223
      %1380 = vmatprep.subr.mxu0 0.0
      %1381 = vmatpush2.msra.mxu0 0.0
      %1382 = vmatprep.subr.mxu0 0.0
      %1383 = vmatpush2.msra.mxu0 0.0
      %1384 = vmatprep.subr.mxu0 0.0
      %1385 = vmatpush2.msra.mxu0 0.0
      %1386 = vmatprep.subr.mxu0 0.0
      %1387 = vmatpush2.msra.mxu0 0.0
      %1388 = vmatprep.subr.mxu0 0.0
      %1389 = vmatpush2.msra.mxu0 0.0
      %1390 = vmatprep.subr.mxu0 0.0
      %1391 = vmatpush2.msra.mxu0 0.0
      %1392 = vmatprep.subr.mxu0 0.0
      %1393 = vmatpush2.msra.mxu0 0.0
      %1394 = vmatprep.subr.mxu0 0.0
      %1395 = vmatpush2.msra.mxu0 0.0
      %1396 = vmatprep.subr.mxu0 0.0
      %1397 = vmatpush2.msra.mxu0 0.0
      %1398 = vmatprep.subr.mxu0 0.0
      %1399 = vmatpush2.msra.mxu0 0.0
      %1400 = vmatprep.subr.mxu0 0.0
      %1401 = vmatpush2.msra.mxu0 0.0
      %1402 = vmatprep.subr.mxu0 0.0
      %1403 = vmatpush2.msra.mxu0 0.0
      %1404 = vmatprep.subr.mxu0 0.0
      %1405 = vmatpush2.msra.mxu0 0.0
      %1406 = vmatprep.subr.mxu0 0.0
      %1407 = vmatpush2.msra.mxu0 0.0
      %1408 = vmatprep.subr.mxu0 0.0
      %1409 = vmatpush2.msra.mxu0 0.0
      %1410 = vmatprep.subr.mxu0 0.0
      %1411 = vmatpush2.msra.mxu0 0.0
      %1412 = vmatprep.mubr.f32.mxu0 0.0
      %1413 = vmatmul.mubr.f32.gmra.mxu0 %v1346
      %v1414 = vpop.f32.mrf.mxu0
      %v1415 = vadd.f32 %v242, %v1414
      %v1416 = vpop.f32.mrf.mxu0
      %1417 = vdwg.mxu0
      %v1418 = vmax.f32 %v1415, 0.0
      %v1420 = vsel %vm325, %v1418, 0
      %1422 = vmatprep.subr.mxu0 0.0
      %1423 = vmatpush1.msra.mxu0 0.0
      %1424 = vmatprep.subr.mxu0 0.0
      %1425 = vmatpush1.msra.mxu0 0.0
      %1426 = vmatprep.subr.mxu0 0.0
      %1427 = vmatpush1.msra.mxu0 0.0
      %1428 = vmatprep.subr.mxu0 0.0
      %1429 = vmatpush1.msra.mxu0 0.0
      %1430 = vmatprep.subr.mxu0 0.0
      %1431 = vmatpush1.msra.mxu0 0.0
      %1432 = vmatprep.subr.mxu0 0.0
      %1433 = vmatpush1.msra.mxu0 0.0
      %1434 = vmatprep.subr.mxu0 0.0
      %1435 = vmatpush1.msra.mxu0 0.0
      %1436 = vmatprep.subr.mxu0 0.0
      %1437 = vmatpush1.msra.mxu0 0.0
      %1438 = vmatprep.subr.mxu0 0.0
      %1439 = vmatpush1.msra.mxu0 %v234
      %1440 = vmatprep.subr.mxu0 0.0
      %1441 = vmatpush1.msra.mxu0 %v233
      %1442 = vmatprep.subr.mxu0 0.0
      %1443 = vmatpush1.msra.mxu0 %v232
      %1444 = vmatprep.subr.mxu0 0.0
      %1445 = vmatpush1.msra.mxu0 %v231
      %1446 = vmatprep.subr.mxu0 0.0
      %1447 = vmatpush1.msra.mxu0 %v230
      %1448 = vmatprep.subr.mxu0 0.0
      %1449 = vmatpush1.msra.mxu0 %v229
      %1450 = vmatprep.subr.mxu0 0.0
      %1451 = vmatpush1.msra.mxu0 %v228
      %1452 = vmatprep.subr.mxu0 0.0
      %1453 = vmatpush1.msra.mxu0 %v227
      %1454 = vmatprep.subr.mxu0 0.0
      %1455 = vmatpush2.msra.mxu0 0.0
      %1456 = vmatprep.subr.mxu0 0.0
      %1457 = vmatpush2.msra.mxu0 0.0
      %1458 = vmatprep.subr.mxu0 0.0
      %1459 = vmatpush2.msra.mxu0 0.0
      %1460 = vmatprep.subr.mxu0 0.0
      %1461 = vmatpush2.msra.mxu0 0.0
      %1462 = vmatprep.subr.mxu0 0.0
      %1463 = vmatpush2.msra.mxu0 0.0
      %1464 = vmatprep.subr.mxu0 0.0
      %1465 = vmatpush2.msra.mxu0 0.0
      %1466 = vmatprep.subr.mxu0 0.0
      %1467 = vmatpush2.msra.mxu0 0.0
      %1468 = vmatprep.subr.mxu0 0.0
      %1469 = vmatpush2.msra.mxu0 0.0
      %1470 = vmatprep.subr.mxu0 0.0
      %1471 = vmatpush2.msra.mxu0 0.0
      %1472 = vmatprep.subr.mxu0 0.0
      %1473 = vmatpush2.msra.mxu0 0.0
      %1474 = vmatprep.subr.mxu0 0.0
      %1475 = vmatpush2.msra.mxu0 0.0
      %1476 = vmatprep.subr.mxu0 0.0
      %1477 = vmatpush2.msra.mxu0 0.0
      %1478 = vmatprep.subr.mxu0 0.0
      %1479 = vmatpush2.msra.mxu0 0.0
      %1480 = vmatprep.subr.mxu0 0.0
      %1481 = vmatpush2.msra.mxu0 0.0
      %1482 = vmatprep.subr.mxu0 0.0
      %1483 = vmatpush2.msra.mxu0 0.0
      %1484 = vmatprep.subr.mxu0 0.0
      %1485 = vmatpush2.msra.mxu0 0.0
      %1486 = vmatprep.mubr.f32.mxu0 0.0
      %1487 = vmatmul.mubr.f32.gmra.mxu0 %v1420
      %v1488 = vpop.f32.mrf.mxu0
      %v1489 = vadd.f32 %v323, %v1488
      %v1490 = vpop.f32.mrf.mxu0
      %1491 = vdwg.mxu0
      %v1492 = vmax.f32 %v1489, 0.0
      %1494 = vrot.lane.b32.xlu0 %v1492, 112
      %v1495 = vpop.permute.xlu0 %1494
      %vm1497 = vcmask 1048448
      %1498 = vst.msk [vmem:[%s222] sm:$0xff] %vm1497, %v1495
      %p1499 = scmp.lt.s32.totalorder %s16, 7
      %s1500 = scalar_select %p1499, %s16, 7
      %s1501 = smul.addr %s1500, 8
      %s1502 = scalar_lea.vmem %s5, %s1501
      // Predicated region
      $region41: #{adapter_forward.1} parent=39 // pred_check
        %p1503 = pneg %p144
      $region42: #{adapter_forward.1} parent=39 // pred_check_branch
        %1505 = sbr.rel (%p1503) target = $region44
      $region43: #{adapter_forward.1} parent=39 // pred_region
        _
      $region44: #{adapter_forward.1} parent=39 // pred_fallthru
        _
    $region40: #{adapter_forward.1} parent=5 // pred_fallthru
      _
    %p1506 = scmp.le.s32.totalorder 2, %s11
    // Predicated region
    $region45: #{adapter_forward.1} parent=5 // pred_check
      %p1507 = pneg %p1506
    $region46: #{adapter_forward.1} parent=5 // pred_check_branch
      %1509 = sbr.rel (%p1507) target = $region48
    $region47: #{adapter_forward.1} parent=5 // pred_region
      %s1510 = ssub.s32 %s11, 2
      // Predicated region
      $region49: #{adapter_forward.1} parent=47 // pred_check
        %p1511 = pneg %p150
      $region50: #{adapter_forward.1} parent=47 // pred_check_branch
        %1513 = sbr.rel (%p1511) target = $region52
      $region51: #{adapter_forward.1} parent=47 // pred_region
        %p1514 = scmp.lt.s32.totalorder %s17, 7
        %s1515 = scalar_select %p1514, %s17, 7
        %s1516 = smul.addr %s1515, 8
        %s1517 = scalar_lea.vmem %s5, %s1516
      $region52: #{adapter_forward.1} parent=47 // pred_fallthru
        _
    $region48: #{adapter_forward.1} parent=5 // pred_fallthru
      _
  $region6: #{adapter_forward.1} parent=0 // loop_footer
    %s15 = sadd.s32 1, %s11
  $region7: #{adapter_forward.1} parent=0 // loop_footer_branch
    %10 = sbr.rel target = $region3
  $region8: #{adapter_forward.1} parent=0 // loop_exit
    _

</llo_original>
